<compile_context>
chip_gen: v7x
topology: tpu7x:2x2x1
jax: 0.10.0
libtpu: 0.0.40
codegen_flags: <defaults>
</compile_context>

<pallas_src>
import functools

import jax
import jax.numpy as jnp
from jax import lax
from jax.experimental import pallas as pl
from jax.experimental.pallas import tpu as pltpu


TIME_STEP = 7


def _pick_dest_block(v):
    """Largest lane-aligned destination-point block (multiple of 128) dividing V."""
    for tp in (1024, 512, 256, 128):
        if v % tp == 0:
            return tp
    return v


def _vmem_limit_bytes():
    """Per-generation VMEM limit: <= ~48 MiB on v7x (64 MiB core), <= 100 MiB on v5e/v6e."""
    try:
        cap = pltpu.get_tpu_info().vmem_capacity_bytes
    except Exception:
        cap = 64 * 1024 * 1024  # conservative fallback (v7x per-core VMEM)
    return int(max(32 * 1024 * 1024, min(cap - 16 * 1024 * 1024, 100 * 1024 * 1024)))


def _diffeo_kernel(grid_ref, flow_ref, out_ref, *, D, H, W, time_step, tp):
    V = D * H * W
    nb = V // tp

    grid = grid_ref[...]                                         # (3, V) identity grid
    flow0 = flow_ref[0] * jnp.float32(1.0 / (2 ** time_step))    # (3, V)

    # Small per-axis source-index iotas (loop invariant); replaces the old
    # persistent V x V row_iota.
    z_iota = lax.broadcasted_iota(jnp.int32, (D, V), 0)
    y_iota = lax.broadcasted_iota(jnp.int32, (H, V), 0)
    x_iota = lax.broadcasted_iota(jnp.int32, (W, V), 0)

    def axis_factor(coord, n, iota):
        # One axis of grid_sample(mode='bilinear', padding_mode='border',
        # align_corners=True):  x in [-1,1] -> [0, n-1], clamp, linear weights.
        c = jnp.clip((coord + 1.0) * jnp.float32(0.5 * (n - 1)), 0.0, jnp.float32(n - 1))
        c0f = jnp.floor(c)
        w1 = c - c0f
        w0 = 1.0 - w1
        i0 = c0f.astype(jnp.int32)
        i1 = jnp.minimum(i0 + 1, n - 1)
        # Both corner terms fused into a single expression (one write). At the
        # border i0 == i1 and the weights correctly sum to 1.
        return jnp.where(iota == i0, w0, 0.0) + jnp.where(iota == i1, w1, 0.0)

    def body(_, flow):
        disp = grid + flow                                   # (3, V) normalized coords
        az = axis_factor(disp[0:1, :], D, z_iota)            # (D, V)
        ay = axis_factor(disp[1:2, :], H, y_iota)            # (H, V)
        ax = axis_factor(disp[2:3, :], W, x_iota)            # (W, V)

        parts = []
        for b in range(nb):                                  # destination-point blocks
            lo, hi = b * tp, (b + 1) * tp
            az_b = az[:, lo:hi]
            ay_b = ay[:, lo:hi]
            ax_b = ax[:, lo:hi]
            # Separable trilinear weights: M[(z,y,x), p] = az[z,p]*ay[y,p]*ax[x,p]
            m = (az_b[:, None, None, :]
                 * ay_b[None, :, None, :]
                 * ax_b[None, None, :, :])                   # (D, H, W, tp)
            m = m.reshape(V, tp)                             # leading-dim merge only
            parts.append(jnp.dot(flow, m, preferred_element_type=jnp.float32))
        sampled = parts[0] if nb == 1 else jnp.concatenate(parts, axis=1)
        return flow + sampled

    out_ref[0] = lax.fori_loop(0, time_step, body, flow0)


def diffeomorphic_transform(flow, time_step=TIME_STEP):
    """flow: [B, 3, D, H, W] float32 (PyTorch NCDHW). Returns same shape."""
    B, C, D, H, W = flow.shape
    assert C == 3
    V = D * H * W
    tp = _pick_dest_block(V)
    flow_flat = flow.reshape(B, 3, V).astype(jnp.float32)

    gd = jnp.linspace(-1.0, 1.0, D, dtype=jnp.float32)
    gh = jnp.linspace(-1.0, 1.0, H, dtype=jnp.float32)
    gw = jnp.linspace(-1.0, 1.0, W, dtype=jnp.float32)
    grid_d, grid_h, grid_w = jnp.meshgrid(gd, gh, gw, indexing="ij")
    grid = jnp.stack(
        [grid_d.reshape(V), grid_h.reshape(V), grid_w.reshape(V)], axis=0
    )  # (3, V)

    kernel = functools.partial(
        _diffeo_kernel, D=D, H=H, W=W, time_step=time_step, tp=tp
    )

    out = pl.pallas_call(
        kernel,
        out_shape=jax.ShapeDtypeStruct((B, 3, V), jnp.float32),
        grid_spec=pltpu.PrefetchScalarGridSpec(
            num_scalar_prefetch=0,
            grid=(B,),
            in_specs=[
                pl.BlockSpec((3, V), lambda b: (0, 0)),        # identity grid (shared)
                pl.BlockSpec((1, 3, V), lambda b: (b, 0, 0)),  # one batch of flow
            ],
            out_specs=pl.BlockSpec((1, 3, V), lambda b: (b, 0, 0)),
        ),
        compiler_params=pltpu.CompilerParams(
            dimension_semantics=("parallel",),
            vmem_limit_bytes=_vmem_limit_bytes(),
        ),
    )(grid, flow_flat)
    return out.reshape(B, 3, D, H, W)


def _reference(flow, time_step=TIME_STEP):
    """Pure-JAX reference (independent gather via map_coordinates)."""
    B, _, D, H, W = flow.shape
    gd = jnp.linspace(-1.0, 1.0, D, dtype=jnp.float32)
    gh = jnp.linspace(-1.0, 1.0, H, dtype=jnp.float32)
    gw = jnp.linspace(-1.0, 1.0, W, dtype=jnp.float32)
    grid_d, grid_h, grid_w = jnp.meshgrid(gd, gh, gw, indexing="ij")
    flow = flow / (2 ** time_step)
    for _ in range(time_step):
        new = []
        for b in range(B):
            iz = jnp.clip((grid_d + flow[b, 0] + 1.0) * 0.5 * (D - 1), 0.0, D - 1)
            iy = jnp.clip((grid_h + flow[b, 1] + 1.0) * 0.5 * (H - 1), 0.0, H - 1)
            ix = jnp.clip((grid_w + flow[b, 2] + 1.0) * 0.5 * (W - 1), 0.0, W - 1)
            sampled = jnp.stack(
                [
                    jax.scipy.ndimage.map_coordinates(
                        flow[b, c], [iz, iy, ix], order=1, mode="nearest"
                    )
                    for c in range(3)
                ],
                axis=0,
            )
            new.append(flow[b] + sampled)
        flow = jnp.stack(new, axis=0)
    return flow


if __name__ == "__main__":
    key = jax.random.PRNGKey(0)
    B, C, D, H, W = 2, 3, 8, 8, 8
    flow = 3.0 * jax.random.normal(key, (B, C, D, H, W), dtype=jnp.float32)

    out = diffeomorphic_transform(flow, time_step=TIME_STEP)
    out = jax.block_until_ready(out)

    ref = jax.block_until_ready(_reference(flow, time_step=TIME_STEP))
    assert out.shape == (B, C, D, H, W)
    assert bool(jnp.all(jnp.isfinite(out)))
    assert bool(jnp.allclose(out, ref, atol=1e-4, rtol=1e-4)), "mismatch vs reference"

    print("KERNEL_OK")
</pallas_src>

<mosaic_0001>
module attributes {stable_mosaic.version = 11 : i64} {
  func.func @_diffeo_kernel(%arg0: i32, %arg1: memref<3x512xf32, #tpu.memory_space<vmem>>, %arg2: memref<1x3x512xf32, #tpu.memory_space<vmem>>, %arg3: memref<1x3x512xf32, #tpu.memory_space<vmem>>) attributes {dimension_semantics = [#tpu.dimension_semantics<parallel>], iteration_bounds = array<i64: 2>, scalar_prefetch = 0 : i64, scratch_operands = 0 : i64, tpu.core_type = #tpu.core_type<tc>, window_params = [{pipeline_mode = #tpu.pipeline_mode<synchronous>, transform_indices = @transform_0, window_bounds = array<i64: 3, 512>}, {transform_indices = @transform_1, window_bounds = array<i64: 1, 3, 512>}, {transform_indices = @transform_2, window_bounds = array<i64: 1, 3, 512>}]} {
    %c0 = arith.constant 0 : index
    %c0_0 = arith.constant 0 : index
    %0 = vector.load %arg1[%c0, %c0_0] : memref<3x512xf32, #tpu.memory_space<vmem>>, vector<3x512xf32>
    %c0_1 = arith.constant 0 : index
    %c0_2 = arith.constant 0 : index
    %c0_3 = arith.constant 0 : index
    %1 = vector.load %arg2[%c0_1, %c0_2, %c0_3] : memref<1x3x512xf32, #tpu.memory_space<vmem>>, vector<1x3x512xf32>
    %2 = vector.shape_cast %1 : vector<1x3x512xf32> to vector<3x512xf32>
    %cst = arith.constant 7.812500e-03 : f32
    %3 = vector.broadcast %cst : f32 to vector<3x512xf32>
    %4 = arith.mulf %2, %3 : vector<3x512xf32>
    %5 = tpu.iota {dimensions = array<i32: 0>} : vector<8x512xi32>
    %6 = tpu.iota {dimensions = array<i32: 0>} : vector<8x512xi32>
    %7 = tpu.iota {dimensions = array<i32: 0>} : vector<8x512xi32>
    %c0_i32 = arith.constant 0 : i32
    %c7_i32 = arith.constant 7 : i32
    %8 = arith.addi %c0_i32, %c7_i32 : i32
    %c1_i32 = arith.constant 1 : i32
    %9 = scf.for %arg4 = %c0_i32 to %8 step %c1_i32 iter_args(%arg5 = %4) -> (vector<3x512xf32>)  : i32 {
      %13 = arith.addf %0, %arg5 : vector<3x512xf32>
      %14 = vector.extract_strided_slice %13 {offsets = [0, 0], sizes = [1, 512], strides = [1, 1]} : vector<3x512xf32> to vector<1x512xf32>
      %cst_7 = arith.constant 1.000000e+00 : f32
      %15 = vector.broadcast %cst_7 : f32 to vector<1x512xf32>
      %16 = arith.addf %14, %15 : vector<1x512xf32>
      %cst_8 = arith.constant 3.500000e+00 : f32
      %17 = vector.broadcast %cst_8 : f32 to vector<1x512xf32>
      %18 = arith.mulf %16, %17 : vector<1x512xf32>
      %cst_9 = arith.constant 0.000000e+00 : f32
      %cst_10 = arith.constant 7.000000e+00 : f32
      %19 = vector.broadcast %cst_9 : f32 to vector<1x512xf32>
      %20 = arith.maximumf %19, %18 : vector<1x512xf32>
      %21 = vector.broadcast %cst_10 : f32 to vector<1x512xf32>
      %22 = arith.minimumf %21, %20 : vector<1x512xf32>
      %23 = math.floor %22 : vector<1x512xf32>
      %24 = arith.subf %22, %23 : vector<1x512xf32>
      %cst_11 = arith.constant 1.000000e+00 : f32
      %25 = vector.broadcast %cst_11 : f32 to vector<1x512xf32>
      %26 = arith.subf %25, %24 : vector<1x512xf32>
      %27 = arith.fptosi %23 : vector<1x512xf32> to vector<1x512xi32>
      %c1_i32_12 = arith.constant 1 : i32
      %28 = vector.broadcast %c1_i32_12 : i32 to vector<1x512xi32>
      %29 = arith.addi %27, %28 : vector<1x512xi32>
      %c7_i32_13 = arith.constant 7 : i32
      %30 = vector.broadcast %c7_i32_13 : i32 to vector<1x512xi32>
      %31 = arith.minsi %29, %30 : vector<1x512xi32>
      %32 = vector.broadcast %27 : vector<1x512xi32> to vector<8x512xi32>
      %33 = arith.cmpi eq, %5, %32 : vector<8x512xi32>
      %cst_14 = arith.constant 0.000000e+00 : f32
      %34 = vector.shape_cast %26 : vector<1x512xf32> to vector<1x512xf32>
      %35 = vector.broadcast %34 : vector<1x512xf32> to vector<8x512xf32>
      %36 = vector.broadcast %cst_14 : f32 to vector<8x512xf32>
      %37 = arith.select %33, %35, %36 : vector<8x512xi1>, vector<8x512xf32>
      %38 = vector.broadcast %31 : vector<1x512xi32> to vector<8x512xi32>
      %39 = arith.cmpi eq, %5, %38 : vector<8x512xi32>
      %cst_15 = arith.constant 0.000000e+00 : f32
      %40 = vector.shape_cast %24 : vector<1x512xf32> to vector<1x512xf32>
      %41 = vector.broadcast %40 : vector<1x512xf32> to vector<8x512xf32>
      %42 = vector.broadcast %cst_15 : f32 to vector<8x512xf32>
      %43 = arith.select %39, %41, %42 : vector<8x512xi1>, vector<8x512xf32>
      %44 = arith.addf %37, %43 : vector<8x512xf32>
      %45 = vector.extract_strided_slice %13 {offsets = [1, 0], sizes = [1, 512], strides = [1, 1]} : vector<3x512xf32> to vector<1x512xf32>
      %cst_16 = arith.constant 1.000000e+00 : f32
      %46 = vector.broadcast %cst_16 : f32 to vector<1x512xf32>
      %47 = arith.addf %45, %46 : vector<1x512xf32>
      %cst_17 = arith.constant 3.500000e+00 : f32
      %48 = vector.broadcast %cst_17 : f32 to vector<1x512xf32>
      %49 = arith.mulf %47, %48 : vector<1x512xf32>
      %cst_18 = arith.constant 0.000000e+00 : f32
      %cst_19 = arith.constant 7.000000e+00 : f32
      %50 = vector.broadcast %cst_18 : f32 to vector<1x512xf32>
      %51 = arith.maximumf %50, %49 : vector<1x512xf32>
      %52 = vector.broadcast %cst_19 : f32 to vector<1x512xf32>
      %53 = arith.minimumf %52, %51 : vector<1x512xf32>
      %54 = math.floor %53 : vector<1x512xf32>
      %55 = arith.subf %53, %54 : vector<1x512xf32>
      %cst_20 = arith.constant 1.000000e+00 : f32
      %56 = vector.broadcast %cst_20 : f32 to vector<1x512xf32>
      %57 = arith.subf %56, %55 : vector<1x512xf32>
      %58 = arith.fptosi %54 : vector<1x512xf32> to vector<1x512xi32>
      %c1_i32_21 = arith.constant 1 : i32
      %59 = vector.broadcast %c1_i32_21 : i32 to vector<1x512xi32>
      %60 = arith.addi %58, %59 : vector<1x512xi32>
      %c7_i32_22 = arith.constant 7 : i32
      %61 = vector.broadcast %c7_i32_22 : i32 to vector<1x512xi32>
      %62 = arith.minsi %60, %61 : vector<1x512xi32>
      %63 = vector.broadcast %58 : vector<1x512xi32> to vector<8x512xi32>
      %64 = arith.cmpi eq, %6, %63 : vector<8x512xi32>
      %cst_23 = arith.constant 0.000000e+00 : f32
      %65 = vector.shape_cast %57 : vector<1x512xf32> to vector<1x512xf32>
      %66 = vector.broadcast %65 : vector<1x512xf32> to vector<8x512xf32>
      %67 = vector.broadcast %cst_23 : f32 to vector<8x512xf32>
      %68 = arith.select %64, %66, %67 : vector<8x512xi1>, vector<8x512xf32>
      %69 = vector.broadcast %62 : vector<1x512xi32> to vector<8x512xi32>
      %70 = arith.cmpi eq, %6, %69 : vector<8x512xi32>
      %cst_24 = arith.constant 0.000000e+00 : f32
      %71 = vector.shape_cast %55 : vector<1x512xf32> to vector<1x512xf32>
      %72 = vector.broadcast %71 : vector<1x512xf32> to vector<8x512xf32>
      %73 = vector.broadcast %cst_24 : f32 to vector<8x512xf32>
      %74 = arith.select %70, %72, %73 : vector<8x512xi1>, vector<8x512xf32>
      %75 = arith.addf %68, %74 : vector<8x512xf32>
      %76 = vector.extract_strided_slice %13 {offsets = [2, 0], sizes = [1, 512], strides = [1, 1]} : vector<3x512xf32> to vector<1x512xf32>
      %cst_25 = arith.constant 1.000000e+00 : f32
      %77 = vector.broadcast %cst_25 : f32 to vector<1x512xf32>
      %78 = arith.addf %76, %77 : vector<1x512xf32>
      %cst_26 = arith.constant 3.500000e+00 : f32
      %79 = vector.broadcast %cst_26 : f32 to vector<1x512xf32>
      %80 = arith.mulf %78, %79 : vector<1x512xf32>
      %cst_27 = arith.constant 0.000000e+00 : f32
      %cst_28 = arith.constant 7.000000e+00 : f32
      %81 = vector.broadcast %cst_27 : f32 to vector<1x512xf32>
      %82 = arith.maximumf %81, %80 : vector<1x512xf32>
      %83 = vector.broadcast %cst_28 : f32 to vector<1x512xf32>
      %84 = arith.minimumf %83, %82 : vector<1x512xf32>
      %85 = math.floor %84 : vector<1x512xf32>
      %86 = arith.subf %84, %85 : vector<1x512xf32>
      %cst_29 = arith.constant 1.000000e+00 : f32
      %87 = vector.broadcast %cst_29 : f32 to vector<1x512xf32>
      %88 = arith.subf %87, %86 : vector<1x512xf32>
      %89 = arith.fptosi %85 : vector<1x512xf32> to vector<1x512xi32>
      %c1_i32_30 = arith.constant 1 : i32
      %90 = vector.broadcast %c1_i32_30 : i32 to vector<1x512xi32>
      %91 = arith.addi %89, %90 : vector<1x512xi32>
      %c7_i32_31 = arith.constant 7 : i32
      %92 = vector.broadcast %c7_i32_31 : i32 to vector<1x512xi32>
      %93 = arith.minsi %91, %92 : vector<1x512xi32>
      %94 = vector.broadcast %89 : vector<1x512xi32> to vector<8x512xi32>
      %95 = arith.cmpi eq, %7, %94 : vector<8x512xi32>
      %cst_32 = arith.constant 0.000000e+00 : f32
      %96 = vector.shape_cast %88 : vector<1x512xf32> to vector<1x512xf32>
      %97 = vector.broadcast %96 : vector<1x512xf32> to vector<8x512xf32>
      %98 = vector.broadcast %cst_32 : f32 to vector<8x512xf32>
      %99 = arith.select %95, %97, %98 : vector<8x512xi1>, vector<8x512xf32>
      %100 = vector.broadcast %93 : vector<1x512xi32> to vector<8x512xi32>
      %101 = arith.cmpi eq, %7, %100 : vector<8x512xi32>
      %cst_33 = arith.constant 0.000000e+00 : f32
      %102 = vector.shape_cast %86 : vector<1x512xf32> to vector<1x512xf32>
      %103 = vector.broadcast %102 : vector<1x512xf32> to vector<8x512xf32>
      %104 = vector.broadcast %cst_33 : f32 to vector<8x512xf32>
      %105 = arith.select %101, %103, %104 : vector<8x512xi1>, vector<8x512xf32>
      %106 = arith.addf %99, %105 : vector<8x512xf32>
      %107 = vector.shape_cast %44 : vector<8x512xf32> to vector<8x1x1x512xf32>
      %108 = vector.shape_cast %75 : vector<8x512xf32> to vector<1x8x1x512xf32>
      %109 = vector.broadcast %107 : vector<8x1x1x512xf32> to vector<8x8x1x512xf32>
      %110 = vector.broadcast %108 : vector<1x8x1x512xf32> to vector<8x8x1x512xf32>
      %111 = arith.mulf %109, %110 : vector<8x8x1x512xf32>
      %112 = vector.shape_cast %106 : vector<8x512xf32> to vector<1x1x8x512xf32>
      %113 = vector.broadcast %111 : vector<8x8x1x512xf32> to vector<8x8x8x512xf32>
      %114 = vector.broadcast %112 : vector<1x1x8x512xf32> to vector<8x8x8x512xf32>
      %115 = arith.mulf %113, %114 : vector<8x8x8x512xf32>
      %116 = vector.shape_cast %115 : vector<8x8x8x512xf32> to vector<512x512xf32>
      %cst_34 = arith.constant dense<0.000000e+00> : vector<3x512xf32>
      %117 = tpu.matmul %arg5, %116, %cst_34 {dimension_numbers = #tpu.dot_dimension_numbers<[1], [0], [0], [1], [0, 0, 1, 1], [], []>} : vector<3x512xf32>, vector<512x512xf32>, vector<3x512xf32> -> vector<3x512xf32>
      %118 = arith.addf %arg5, %117 : vector<3x512xf32>
      scf.yield %118 : vector<3x512xf32>
    }
    %c0_4 = arith.constant 0 : index
    %c0_5 = arith.constant 0 : index
    %c0_6 = arith.constant 0 : index
    %10 = vector.load %arg3[%c0_4, %c0_5, %c0_6] : memref<1x3x512xf32, #tpu.memory_space<vmem>>, vector<1x3x512xf32>
    %11 = vector.shape_cast %10 : vector<1x3x512xf32> to vector<3x512xf32>
    %12 = vector.shape_cast %9 : vector<3x512xf32> to vector<1x3x512xf32>
    tpu.vector_store %arg3[%c0_4, %c0_5, %c0_6], %12 {strides = array<i32>} : memref<1x3x512xf32, #tpu.memory_space<vmem>>, vector<1x3x512xf32>,
    return
  }
  func.func @transform_0(%arg0: i32) -> (i32, i32) {
    %c0_i32 = arith.constant 0 : i32
    %c0_i32_0 = arith.constant 0 : i32
    %c0_i32_1 = arith.constant 0 : i32
    return %c0_i32, %c0_i32_0 : i32, i32
  }
  func.func @transform_1(%arg0: i32) -> (i32, i32, i32) {
    %c0_i32 = arith.constant 0 : i32
    %c0_i32_0 = arith.constant 0 : i32
    %c0_i32_1 = arith.constant 0 : i32
    return %arg0, %c0_i32, %c0_i32_0 : i32, i32, i32
  }
  func.func @transform_2(%arg0: i32) -> (i32, i32, i32) {
    %c0_i32 = arith.constant 0 : i32
    %c0_i32_0 = arith.constant 0 : i32
    %c0_i32_1 = arith.constant 0 : i32
    return %arg0, %c0_i32, %c0_i32_0 : i32, i32, i32
  }
}

</mosaic_0001>

<llo_original>
// kernel: tpu_custom_call.1
$region0: #{tpu_custom_call.1}
  #allocation0 [shape = 'u32[]', space=smem, size = 0x4, offset = 0x4, fixed_abs, tag = 'smem constant byte address 0x4 - core index']
  #allocation1 [shape = 'u32[144,128]{1,0:T(1,128)}', space=vmem, size = 0x12000, scoped, tag = 'internal scratch']
  %s0 = inlined_call_operand.vmem [shape: f32[3,512], index: 0, kind: input, shape index: {}]
  %s1 = inlined_call_operand.vmem [shape: f32[2,3,512], index: 1, kind: input, shape index: {}]
  %s2 = inlined_call_operand.vmem [shape: f32[2,3,512], index: 2, kind: output, shape index: {}]
  %s3 = sld [smem:[#allocation0]]
  $region48: #{tpu_custom_call.1} parent=0
    _
  %s5 = ssub.s32 1, %s3
  %s6 = scalar_select 0, %s5, %s3
  loop: start=0, step=1, limit=4
  $region2: #{tpu_custom_call.1} parent=0 // loop_pre_header
    _
  $region3: #{tpu_custom_call.1} parent=0 // loop_header
    %s8 = sphi 0, %s12
    %p9 = scmp.ge.s32.totalorder %s8, 4
    %s16 = sphi 0, %s16
    %s18 = sphi 0, %s16
    %s19 = sphi 0, %s18
    %s33 = sphi 0, %s19
    %s39 = sphi 0, %s41
    %s42 = sphi 0, %s39
    %s43 = sphi 0, %s42
    %s59 = sphi 0, %s43
    %s65 = sphi 0, %s67
    %s68 = sphi 0, %s65
    %s69 = sphi 0, %s68
    %s85 = sphi 0, %s69
  $region4: #{tpu_custom_call.1} parent=0 // loop_header_branch
    %11 = sbr.rel (%p9) target = $region8
  $region5: #{tpu_custom_call.1} parent=0 // loop_body
    %s13 = ssub.s32 %s8, 1
    %s14 = ssub.s32 %s8, 2
    %s15 = sadd.s32 %s8, 1
    %s17 = sadd.s32 %s16, 1
    %p20 = scmp.eq.s32.totalorder %s8, 1
    %p21 = scmp.ne.s32.totalorder %s16, %s18
    %p22 = scmp.eq.s32.totalorder %s8, 0
    %p23 = por %p21, %p22
    %p24 = scmp.ne.s32.totalorder %s16, %s18
    %p25 = scmp.eq.s32.totalorder %s13, 1
    %p26 = por %p24, %p25
    %p27 = scmp.ne.s32.totalorder %s18, %s19
    %p28 = scmp.eq.s32.totalorder %s13, 0
    %p29 = por %p27, %p28
    %p30 = scmp.ne.s32.totalorder %s18, %s19
    %p31 = scmp.eq.s32.totalorder %s14, 1
    %p32 = por %p30, %p31
    %p34 = scmp.ne.s32.totalorder %s19, %s33
    %p35 = scmp.eq.s32.totalorder %s14, 0
    %p36 = por %p34, %p35
    %s37 = ssub.s32 %s8, %s15
    %p38 = scmp.eq.s32.totalorder %s37, 0
    %s40 = sadd.s32 %s39, 1
    %s41 = scalar_select %p38, %s39, %s40
    %p44 = pneg %p38
    %p45 = scmp.eq.s32.totalorder %s8, 1
    %p46 = por %p44, %p45
    %p47 = scmp.ne.s32.totalorder %s39, %s42
    %p48 = scmp.eq.s32.totalorder %s8, 0
    %p49 = por %p47, %p48
    %p50 = scmp.ne.s32.totalorder %s39, %s42
    %p51 = scmp.eq.s32.totalorder %s13, 1
    %p52 = por %p50, %p51
    %p53 = scmp.ne.s32.totalorder %s42, %s43
    %p54 = scmp.eq.s32.totalorder %s13, 0
    %p55 = por %p53, %p54
    %p56 = scmp.ne.s32.totalorder %s42, %s43
    %p57 = scmp.eq.s32.totalorder %s14, 1
    %p58 = por %p56, %p57
    %p60 = scmp.ne.s32.totalorder %s43, %s59
    %p61 = scmp.eq.s32.totalorder %s14, 0
    %p62 = por %p60, %p61
    %s63 = ssub.s32 %s8, %s15
    %p64 = scmp.eq.s32.totalorder %s63, 0
    %s66 = sadd.s32 %s65, 1
    %s67 = scalar_select %p64, %s65, %s66
    %p70 = pneg %p64
    %p71 = scmp.eq.s32.totalorder %s8, 1
    %p72 = por %p70, %p71
    %p73 = scmp.ne.s32.totalorder %s65, %s68
    %p74 = scmp.eq.s32.totalorder %s8, 0
    %p75 = por %p73, %p74
    %p76 = scmp.ne.s32.totalorder %s65, %s68
    %p77 = scmp.eq.s32.totalorder %s13, 1
    %p78 = por %p76, %p77
    %p79 = scmp.ne.s32.totalorder %s68, %s69
    %p80 = scmp.eq.s32.totalorder %s13, 0
    %p81 = por %p79, %p80
    %p82 = scmp.ne.s32.totalorder %s68, %s69
    %p83 = scmp.eq.s32.totalorder %s14, 1
    %p84 = por %p82, %p83
    %p86 = scmp.ne.s32.totalorder %s69, %s85
    %p87 = scmp.eq.s32.totalorder %s14, 0
    %p88 = por %p86, %p87
    %p89 = scmp.le.s32.totalorder 1, %s8
    %p90 = scmp.lt.s32.totalorder %s8, 3
    %p91 = pnand %p89, %p90
    %p92 = pneg %p91
    // Predicated region
    $region9: #{tpu_custom_call.1} parent=5 // pred_check
      _
    $region10: #{tpu_custom_call.1} parent=5 // pred_check_branch
      %94 = sbr.rel (%p91) target = $region12
    $region11: #{tpu_custom_call.1} parent=5 // pred_region
      %s95 = ssub.s32 %s8, 1
      // Predicated region
      $region13: #{tpu_custom_call.1} parent=11 // pred_check
        %p96 = pneg %p29
      $region14: #{tpu_custom_call.1} parent=11 // pred_check_branch
        %98 = sbr.rel (%p96) target = $region16
      $region15: #{tpu_custom_call.1} parent=11 // pred_region
        _
      $region16: #{tpu_custom_call.1} parent=11 // pred_fallthru
        _
    $region12: #{tpu_custom_call.1} parent=5 // pred_fallthru
      _
    %p99 = scmp.lt.s32.totalorder %s8, 2
    // Predicated region
    $region17: #{tpu_custom_call.1} parent=5 // pred_check
      %p100 = pneg %p99
    $region18: #{tpu_custom_call.1} parent=5 // pred_check_branch
      %102 = sbr.rel (%p100) target = $region20
    $region19: #{tpu_custom_call.1} parent=5 // pred_region
      // Predicated region
      $region21: #{tpu_custom_call.1} parent=19 // pred_check
        %p103 = pneg %p49
      $region22: #{tpu_custom_call.1} parent=19 // pred_check_branch
        %105 = sbr.rel (%p103) target = $region24
      $region23: #{tpu_custom_call.1} parent=19 // pred_region
        %p106 = scmp.lt.s32.totalorder %s8, 1
        %s107 = scalar_select %p106, %s8, 1
        %s108 = smul.addr %s107, 4
        %s109 = smul.addr %s108, 4
        %s110 = scalar_lea.vmem %s1, %s109
      $region24: #{tpu_custom_call.1} parent=19 // pred_fallthru
        _
    $region20: #{tpu_custom_call.1} parent=5 // pred_fallthru
      _
    %p111 = scmp.le.s32.totalorder 1, %s8
    %p112 = scmp.lt.s32.totalorder %s8, 3
    %p113 = pnand %p111, %p112
    %p114 = pneg %p113
    // Predicated region
    $region25: #{tpu_custom_call.1} parent=5 // pred_check
      _
    $region26: #{tpu_custom_call.1} parent=5 // pred_check_branch
      %116 = sbr.rel (%p113) target = $region28
    $region27: #{tpu_custom_call.1} parent=5 // pred_region
      %s117 = ssub.s32 %s8, 1
      %p118 = pneg %p29
      %p119 = pneg %p26
      %p120 = scmp.lt.s32.totalorder %s13, 1
      %s121 = scalar_select %p120, %s13, 1
      %s122 = smul.addr %s121, 4
      %s123 = smul.addr %s122, 4
      %s124 = scalar_lea.vmem %s1, %s123
      %p125 = pneg %p55
      %p126 = pneg %p52
      %p127 = pneg %p81
      %p128 = pneg %p78
      %p129 = scmp.lt.s32.totalorder %s13, 1
      %s130 = scalar_select %p129, %s13, 1
      %s131 = smul.addr %s130, 4
      %s132 = smul.addr %s131, 4
      %s133 = scalar_lea.vmem %s2, %s132
      %p134 = scmp.lt.s32.totalorder %s13, 1
      %s135 = scalar_select %p134, %s13, 1
      %s136 = smul.addr %s135, 4
      %s137 = smul.addr %s136, 4
      %s138 = scalar_lea.vmem %s1, %s137
      %p139 = scmp.lt.s32.totalorder %s13, 1
      %s140 = scalar_select %p139, %s13, 1
      %s141 = smul.addr %s140, 4
      %s142 = smul.addr %s141, 4
      %s143 = scalar_lea.vmem %s2, %s142
      %v144 = vld [vmem:[%s0] sm:$0x77]
      %v145 = vld [vmem:[%s0 + $0x8] sm:$0x77]
      %v146 = vld [vmem:[%s138] sm:$0x77]
      %v147 = vld [vmem:[%s138 + $0x8] sm:$0x77]
      %v148 = vmul.f32 %v146, 0.0078125
      %v149 = vmul.f32 %v147, 0.0078125
      %v150 = vlaneseq
      %v151 = vshrl.u32 %v150, 7
      loop: start=0, step=1, limit=7
      $region29: #{tpu_custom_call.1} parent=27 // loop_pre_header
        _
      $region30: #{tpu_custom_call.1} parent=27 // loop_header
        %s153 = sphi 0, %s157
        %p154 = scmp.ge.s32.totalorder %s153, 7
        %v158 = vphi %v148, %v2778
        %v159 = vphi %v149, %v2779
      $region31: #{tpu_custom_call.1} parent=27 // loop_header_branch
        %156 = sbr.rel (%p154) target = $region35
      $region32: #{tpu_custom_call.1} parent=27 // loop_body
        %v160 = vadd.f32 %v144, %v158
        %v161 = vadd.f32 %v145, %v159
        %v162 = vadd.f32 %v160, 1.0
        %v163 = vadd.f32 %v161, 1.0
        %v164 = vmul.f32 %v162, 3.5
        %v165 = vmul.f32 %v163, 3.5
        %v166 = vmax.f32 %v164, 0.0
        %v167 = vmax.f32 %v165, 0.0
        %v168 = vmin.f32 %v166, 7.0
        %v169 = vmin.f32 %v167, 7.0
        %v170 = vfloor.f32 %v168
        %v171 = vfloor.f32 %v169
        %v172 = vsub.f32 %v168, %v170
        %v173 = vsub.f32 %v169, %v171
        %v174 = vsub.f32 1.0, %v172
        %v175 = vsub.f32 1.0, %v173
        %v176 = vcvt.f32.s32.to.zero.pseudo %v170
        %v177 = vcvt.f32.s32.to.zero.pseudo %v171
        %v178 = vadd.s32 %v176, 1
        %v179 = vadd.s32 %v177, 1
        %vm180 = vcmp.lt.s32.totalorder %v178, 7
        %v181 = vsel %vm180, %v178, 7
        %vm182 = vcmp.lt.s32.totalorder %v179, 7
        %v183 = vsel %vm182, %v179, 7
        %v184 = vlaneseq
        %v185 = vshrl.u32 %v184, 7
        %v186 = vsub.s32 0, %v185
        %v187 = vrot.slane %v176, %v186
        %v188 = vlaneseq
        %v189 = vshrl.u32 %v188, 7
        %v190 = vsub.s32 4, %v189
        %v191 = vrot.slane %v176, %v190
        %v192 = vlaneseq
        %v193 = vshrl.u32 %v192, 7
        %v194 = vsub.s32 0, %v193
        %v195 = vrot.slane %v177, %v194
        %v196 = vlaneseq
        %v197 = vshrl.u32 %v196, 7
        %v198 = vsub.s32 4, %v197
        %v199 = vrot.slane %v177, %v198
        %v200 = vlaneseq
        %v201 = vshrl.u32 %v200, 7
        %v202 = vsub.s32 0, %v201
        %v203 = vrot.slane %v187, %v202
        %v204 = vlaneseq
        %v205 = vshrl.u32 %v204, 7
        %v206 = vsub.s32 0, %v205
        %v207 = vrot.slane %v191, %v206
        %v208 = vlaneseq
        %v209 = vshrl.u32 %v208, 7
        %v210 = vsub.s32 0, %v209
        %v211 = vrot.slane %v195, %v210
        %v212 = vlaneseq
        %v213 = vshrl.u32 %v212, 7
        %v214 = vsub.s32 0, %v213
        %v215 = vrot.slane %v199, %v214
        %vm216 = vcmp.eq.s32.totalorder %v151, %v203
        %vm217 = vcmp.eq.s32.totalorder %v151, %v207
        %vm218 = vcmp.eq.s32.totalorder %v151, %v211
        %vm219 = vcmp.eq.s32.totalorder %v151, %v215
        %v222 = vlaneseq
        %v223 = vshrl.u32 %v222, 7
        %v224 = vsub.s32 0, %v223
        %v225 = vrot.slane %v174, %v224
        %v226 = vlaneseq
        %v227 = vshrl.u32 %v226, 7
        %v228 = vsub.s32 4, %v227
        %v229 = vrot.slane %v174, %v228
        %v230 = vlaneseq
        %v231 = vshrl.u32 %v230, 7
        %v232 = vsub.s32 0, %v231
        %v233 = vrot.slane %v175, %v232
        %v234 = vlaneseq
        %v235 = vshrl.u32 %v234, 7
        %v236 = vsub.s32 4, %v235
        %v237 = vrot.slane %v175, %v236
        %v242 = vlaneseq
        %v243 = vshrl.u32 %v242, 7
        %v244 = vsub.s32 0, %v243
        %v245 = vrot.slane %v225, %v244
        %v246 = vlaneseq
        %v247 = vshrl.u32 %v246, 7
        %v248 = vsub.s32 0, %v247
        %v249 = vrot.slane %v229, %v248
        %v250 = vlaneseq
        %v251 = vshrl.u32 %v250, 7
        %v252 = vsub.s32 0, %v251
        %v253 = vrot.slane %v233, %v252
        %v254 = vlaneseq
        %v255 = vshrl.u32 %v254, 7
        %v256 = vsub.s32 0, %v255
        %v257 = vrot.slane %v237, %v256
        %v258 = vsel %vm216, %v245, 0.0
        %v259 = vsel %vm217, %v249, 0.0
        %v260 = vsel %vm218, %v253, 0.0
        %v261 = vsel %vm219, %v257, 0.0
        %v262 = vlaneseq
        %v263 = vshrl.u32 %v262, 7
        %v264 = vsub.s32 0, %v263
        %v265 = vrot.slane %v181, %v264
        %v266 = vlaneseq
        %v267 = vshrl.u32 %v266, 7
        %v268 = vsub.s32 4, %v267
        %v269 = vrot.slane %v181, %v268
        %v270 = vlaneseq
        %v271 = vshrl.u32 %v270, 7
        %v272 = vsub.s32 0, %v271
        %v273 = vrot.slane %v183, %v272
        %v274 = vlaneseq
        %v275 = vshrl.u32 %v274, 7
        %v276 = vsub.s32 4, %v275
        %v277 = vrot.slane %v183, %v276
        %v278 = vlaneseq
        %v279 = vshrl.u32 %v278, 7
        %v280 = vsub.s32 0, %v279
        %v281 = vrot.slane %v265, %v280
        %v282 = vlaneseq
        %v283 = vshrl.u32 %v282, 7
        %v284 = vsub.s32 0, %v283
        %v285 = vrot.slane %v269, %v284
        %v286 = vlaneseq
        %v287 = vshrl.u32 %v286, 7
        %v288 = vsub.s32 0, %v287
        %v289 = vrot.slane %v273, %v288
        %v290 = vlaneseq
        %v291 = vshrl.u32 %v290, 7
        %v292 = vsub.s32 0, %v291
        %v293 = vrot.slane %v277, %v292
        %vm294 = vcmp.eq.s32.totalorder %v151, %v281
        %vm295 = vcmp.eq.s32.totalorder %v151, %v285
        %vm296 = vcmp.eq.s32.totalorder %v151, %v289
        %vm297 = vcmp.eq.s32.totalorder %v151, %v293
        %v300 = vlaneseq
        %v301 = vshrl.u32 %v300, 7
        %v302 = vsub.s32 0, %v301
        %v303 = vrot.slane %v172, %v302
        %v304 = vlaneseq
        %v305 = vshrl.u32 %v304, 7
        %v306 = vsub.s32 4, %v305
        %v307 = vrot.slane %v172, %v306
        %v308 = vlaneseq
        %v309 = vshrl.u32 %v308, 7
        %v310 = vsub.s32 0, %v309
        %v311 = vrot.slane %v173, %v310
        %v312 = vlaneseq
        %v313 = vshrl.u32 %v312, 7
        %v314 = vsub.s32 4, %v313
        %v315 = vrot.slane %v173, %v314
        %v320 = vlaneseq
        %v321 = vshrl.u32 %v320, 7
        %v322 = vsub.s32 0, %v321
        %v323 = vrot.slane %v303, %v322
        %v324 = vlaneseq
        %v325 = vshrl.u32 %v324, 7
        %v326 = vsub.s32 0, %v325
        %v327 = vrot.slane %v307, %v326
        %v328 = vlaneseq
        %v329 = vshrl.u32 %v328, 7
        %v330 = vsub.s32 0, %v329
        %v331 = vrot.slane %v311, %v330
        %v332 = vlaneseq
        %v333 = vshrl.u32 %v332, 7
        %v334 = vsub.s32 0, %v333
        %v335 = vrot.slane %v315, %v334
        %v336 = vsel %vm294, %v323, 0.0
        %v337 = vsel %vm295, %v327, 0.0
        %v338 = vsel %vm296, %v331, 0.0
        %v339 = vsel %vm297, %v335, 0.0
        %v340 = vadd.f32 %v258, %v336
        %v341 = vadd.f32 %v259, %v337
        %v342 = vadd.f32 %v260, %v338
        %v343 = vadd.f32 %v261, %v339
        %v344 = vlaneseq
        %v345 = vshrl.u32 %v344, 7
        %v346 = vsub.s32 1, %v345
        %v347 = vrot.slane %v176, %v346
        %v348 = vlaneseq
        %v349 = vshrl.u32 %v348, 7
        %v350 = vsub.s32 5, %v349
        %v351 = vrot.slane %v176, %v350
        %v352 = vlaneseq
        %v353 = vshrl.u32 %v352, 7
        %v354 = vsub.s32 1, %v353
        %v355 = vrot.slane %v177, %v354
        %v356 = vlaneseq
        %v357 = vshrl.u32 %v356, 7
        %v358 = vsub.s32 5, %v357
        %v359 = vrot.slane %v177, %v358
        %v360 = vlaneseq
        %v361 = vshrl.u32 %v360, 7
        %v362 = vsub.s32 1, %v361
        %v363 = vrot.slane %v347, %v362
        %v364 = vlaneseq
        %v365 = vshrl.u32 %v364, 7
        %v366 = vsub.s32 1, %v365
        %v367 = vrot.slane %v351, %v366
        %v368 = vlaneseq
        %v369 = vshrl.u32 %v368, 7
        %v370 = vsub.s32 1, %v369
        %v371 = vrot.slane %v355, %v370
        %v372 = vlaneseq
        %v373 = vshrl.u32 %v372, 7
        %v374 = vsub.s32 1, %v373
        %v375 = vrot.slane %v359, %v374
        %vm376 = vcmp.eq.s32.totalorder %v151, %v363
        %vm377 = vcmp.eq.s32.totalorder %v151, %v367
        %vm378 = vcmp.eq.s32.totalorder %v151, %v371
        %vm379 = vcmp.eq.s32.totalorder %v151, %v375
        %v380 = vlaneseq
        %v381 = vshrl.u32 %v380, 7
        %v382 = vsub.s32 1, %v381
        %v383 = vrot.slane %v174, %v382
        %v384 = vlaneseq
        %v385 = vshrl.u32 %v384, 7
        %v386 = vsub.s32 5, %v385
        %v387 = vrot.slane %v174, %v386
        %v388 = vlaneseq
        %v389 = vshrl.u32 %v388, 7
        %v390 = vsub.s32 1, %v389
        %v391 = vrot.slane %v175, %v390
        %v392 = vlaneseq
        %v393 = vshrl.u32 %v392, 7
        %v394 = vsub.s32 5, %v393
        %v395 = vrot.slane %v175, %v394
        %v400 = vlaneseq
        %v401 = vshrl.u32 %v400, 7
        %v402 = vsub.s32 1, %v401
        %v403 = vrot.slane %v383, %v402
        %v404 = vlaneseq
        %v405 = vshrl.u32 %v404, 7
        %v406 = vsub.s32 1, %v405
        %v407 = vrot.slane %v387, %v406
        %v408 = vlaneseq
        %v409 = vshrl.u32 %v408, 7
        %v410 = vsub.s32 1, %v409
        %v411 = vrot.slane %v391, %v410
        %v412 = vlaneseq
        %v413 = vshrl.u32 %v412, 7
        %v414 = vsub.s32 1, %v413
        %v415 = vrot.slane %v395, %v414
        %v416 = vsel %vm376, %v403, 0.0
        %v417 = vsel %vm377, %v407, 0.0
        %v418 = vsel %vm378, %v411, 0.0
        %v419 = vsel %vm379, %v415, 0.0
        %v420 = vlaneseq
        %v421 = vshrl.u32 %v420, 7
        %v422 = vsub.s32 1, %v421
        %v423 = vrot.slane %v181, %v422
        %v424 = vlaneseq
        %v425 = vshrl.u32 %v424, 7
        %v426 = vsub.s32 5, %v425
        %v427 = vrot.slane %v181, %v426
        %v428 = vlaneseq
        %v429 = vshrl.u32 %v428, 7
        %v430 = vsub.s32 1, %v429
        %v431 = vrot.slane %v183, %v430
        %v432 = vlaneseq
        %v433 = vshrl.u32 %v432, 7
        %v434 = vsub.s32 5, %v433
        %v435 = vrot.slane %v183, %v434
        %v436 = vlaneseq
        %v437 = vshrl.u32 %v436, 7
        %v438 = vsub.s32 1, %v437
        %v439 = vrot.slane %v423, %v438
        %v440 = vlaneseq
        %v441 = vshrl.u32 %v440, 7
        %v442 = vsub.s32 1, %v441
        %v443 = vrot.slane %v427, %v442
        %v444 = vlaneseq
        %v445 = vshrl.u32 %v444, 7
        %v446 = vsub.s32 1, %v445
        %v447 = vrot.slane %v431, %v446
        %v448 = vlaneseq
        %v449 = vshrl.u32 %v448, 7
        %v450 = vsub.s32 1, %v449
        %v451 = vrot.slane %v435, %v450
        %vm452 = vcmp.eq.s32.totalorder %v151, %v439
        %vm453 = vcmp.eq.s32.totalorder %v151, %v443
        %vm454 = vcmp.eq.s32.totalorder %v151, %v447
        %vm455 = vcmp.eq.s32.totalorder %v151, %v451
        %v456 = vlaneseq
        %v457 = vshrl.u32 %v456, 7
        %v458 = vsub.s32 1, %v457
        %v459 = vrot.slane %v172, %v458
        %v460 = vlaneseq
        %v461 = vshrl.u32 %v460, 7
        %v462 = vsub.s32 5, %v461
        %v463 = vrot.slane %v172, %v462
        %v464 = vlaneseq
        %v465 = vshrl.u32 %v464, 7
        %v466 = vsub.s32 1, %v465
        %v467 = vrot.slane %v173, %v466
        %v468 = vlaneseq
        %v469 = vshrl.u32 %v468, 7
        %v470 = vsub.s32 5, %v469
        %v471 = vrot.slane %v173, %v470
        %v476 = vlaneseq
        %v477 = vshrl.u32 %v476, 7
        %v478 = vsub.s32 1, %v477
        %v479 = vrot.slane %v459, %v478
        %v480 = vlaneseq
        %v481 = vshrl.u32 %v480, 7
        %v482 = vsub.s32 1, %v481
        %v483 = vrot.slane %v463, %v482
        %v484 = vlaneseq
        %v485 = vshrl.u32 %v484, 7
        %v486 = vsub.s32 1, %v485
        %v487 = vrot.slane %v467, %v486
        %v488 = vlaneseq
        %v489 = vshrl.u32 %v488, 7
        %v490 = vsub.s32 1, %v489
        %v491 = vrot.slane %v471, %v490
        %v492 = vsel %vm452, %v479, 0.0
        %v493 = vsel %vm453, %v483, 0.0
        %v494 = vsel %vm454, %v487, 0.0
        %v495 = vsel %vm455, %v491, 0.0
        %v496 = vadd.f32 %v416, %v492
        %v497 = vadd.f32 %v417, %v493
        %v498 = vadd.f32 %v418, %v494
        %v499 = vadd.f32 %v419, %v495
        %v500 = vlaneseq
        %v501 = vshrl.u32 %v500, 7
        %v502 = vsub.s32 2, %v501
        %v503 = vrot.slane %v176, %v502
        %v504 = vlaneseq
        %v505 = vshrl.u32 %v504, 7
        %v506 = vsub.s32 6, %v505
        %v507 = vrot.slane %v176, %v506
        %v508 = vlaneseq
        %v509 = vshrl.u32 %v508, 7
        %v510 = vsub.s32 2, %v509
        %v511 = vrot.slane %v177, %v510
        %v512 = vlaneseq
        %v513 = vshrl.u32 %v512, 7
        %v514 = vsub.s32 6, %v513
        %v515 = vrot.slane %v177, %v514
        %v516 = vlaneseq
        %v517 = vshrl.u32 %v516, 7
        %v518 = vsub.s32 2, %v517
        %v519 = vrot.slane %v503, %v518
        %v520 = vlaneseq
        %v521 = vshrl.u32 %v520, 7
        %v522 = vsub.s32 2, %v521
        %v523 = vrot.slane %v507, %v522
        %v524 = vlaneseq
        %v525 = vshrl.u32 %v524, 7
        %v526 = vsub.s32 2, %v525
        %v527 = vrot.slane %v511, %v526
        %v528 = vlaneseq
        %v529 = vshrl.u32 %v528, 7
        %v530 = vsub.s32 2, %v529
        %v531 = vrot.slane %v515, %v530
        %vm532 = vcmp.eq.s32.totalorder %v151, %v519
        %vm533 = vcmp.eq.s32.totalorder %v151, %v523
        %vm534 = vcmp.eq.s32.totalorder %v151, %v527
        %vm535 = vcmp.eq.s32.totalorder %v151, %v531
        %v536 = vlaneseq
        %v537 = vshrl.u32 %v536, 7
        %v538 = vsub.s32 2, %v537
        %v539 = vrot.slane %v174, %v538
        %v540 = vlaneseq
        %v541 = vshrl.u32 %v540, 7
        %v542 = vsub.s32 6, %v541
        %v543 = vrot.slane %v174, %v542
        %v544 = vlaneseq
        %v545 = vshrl.u32 %v544, 7
        %v546 = vsub.s32 2, %v545
        %v547 = vrot.slane %v175, %v546
        %v548 = vlaneseq
        %v549 = vshrl.u32 %v548, 7
        %v550 = vsub.s32 6, %v549
        %v551 = vrot.slane %v175, %v550
        %v556 = vlaneseq
        %v557 = vshrl.u32 %v556, 7
        %v558 = vsub.s32 2, %v557
        %v559 = vrot.slane %v539, %v558
        %v560 = vlaneseq
        %v561 = vshrl.u32 %v560, 7
        %v562 = vsub.s32 2, %v561
        %v563 = vrot.slane %v543, %v562
        %v564 = vlaneseq
        %v565 = vshrl.u32 %v564, 7
        %v566 = vsub.s32 2, %v565
        %v567 = vrot.slane %v547, %v566
        %v568 = vlaneseq
        %v569 = vshrl.u32 %v568, 7
        %v570 = vsub.s32 2, %v569
        %v571 = vrot.slane %v551, %v570
        %v572 = vsel %vm532, %v559, 0.0
        %v573 = vsel %vm533, %v563, 0.0
        %v574 = vsel %vm534, %v567, 0.0
        %v575 = vsel %vm535, %v571, 0.0
        %v576 = vlaneseq
        %v577 = vshrl.u32 %v576, 7
        %v578 = vsub.s32 2, %v577
        %v579 = vrot.slane %v181, %v578
        %v580 = vlaneseq
        %v581 = vshrl.u32 %v580, 7
        %v582 = vsub.s32 6, %v581
        %v583 = vrot.slane %v181, %v582
        %v584 = vlaneseq
        %v585 = vshrl.u32 %v584, 7
        %v586 = vsub.s32 2, %v585
        %v587 = vrot.slane %v183, %v586
        %v588 = vlaneseq
        %v589 = vshrl.u32 %v588, 7
        %v590 = vsub.s32 6, %v589
        %v591 = vrot.slane %v183, %v590
        %v592 = vlaneseq
        %v593 = vshrl.u32 %v592, 7
        %v594 = vsub.s32 2, %v593
        %v595 = vrot.slane %v579, %v594
        %v596 = vlaneseq
        %v597 = vshrl.u32 %v596, 7
        %v598 = vsub.s32 2, %v597
        %v599 = vrot.slane %v583, %v598
        %v600 = vlaneseq
        %v601 = vshrl.u32 %v600, 7
        %v602 = vsub.s32 2, %v601
        %v603 = vrot.slane %v587, %v602
        %v604 = vlaneseq
        %v605 = vshrl.u32 %v604, 7
        %v606 = vsub.s32 2, %v605
        %v607 = vrot.slane %v591, %v606
        %vm608 = vcmp.eq.s32.totalorder %v151, %v595
        %vm609 = vcmp.eq.s32.totalorder %v151, %v599
        %vm610 = vcmp.eq.s32.totalorder %v151, %v603
        %vm611 = vcmp.eq.s32.totalorder %v151, %v607
        %v612 = vlaneseq
        %v613 = vshrl.u32 %v612, 7
        %v614 = vsub.s32 2, %v613
        %v615 = vrot.slane %v172, %v614
        %v616 = vlaneseq
        %v617 = vshrl.u32 %v616, 7
        %v618 = vsub.s32 6, %v617
        %v619 = vrot.slane %v172, %v618
        %v620 = vlaneseq
        %v621 = vshrl.u32 %v620, 7
        %v622 = vsub.s32 2, %v621
        %v623 = vrot.slane %v173, %v622
        %v624 = vlaneseq
        %v625 = vshrl.u32 %v624, 7
        %v626 = vsub.s32 6, %v625
        %v627 = vrot.slane %v173, %v626
        %v632 = vlaneseq
        %v633 = vshrl.u32 %v632, 7
        %v634 = vsub.s32 2, %v633
        %v635 = vrot.slane %v615, %v634
        %v636 = vlaneseq
        %v637 = vshrl.u32 %v636, 7
        %v638 = vsub.s32 2, %v637
        %v639 = vrot.slane %v619, %v638
        %v640 = vlaneseq
        %v641 = vshrl.u32 %v640, 7
        %v642 = vsub.s32 2, %v641
        %v643 = vrot.slane %v623, %v642
        %v644 = vlaneseq
        %v645 = vshrl.u32 %v644, 7
        %v646 = vsub.s32 2, %v645
        %v647 = vrot.slane %v627, %v646
        %v648 = vsel %vm608, %v635, 0.0
        %v649 = vsel %vm609, %v639, 0.0
        %v650 = vsel %vm610, %v643, 0.0
        %v651 = vsel %vm611, %v647, 0.0
        %v652 = vadd.f32 %v572, %v648
        %v653 = vadd.f32 %v573, %v649
        %v654 = vadd.f32 %v574, %v650
        %v655 = vadd.f32 %v575, %v651
        %v660 = vcombine.low %v340, %v341
        %v661 = vcombine.high %v340, %v341
        %v662 = vcombine.low %v342, %v343
        %v663 = vcombine.high %v342, %v343
        %v665 = vunpack.c.l.s4 1966171168
        %v666 = vunpack.c.0.s8 %v665
        %v667 = vlaneseq
        %v668 = vshrl.u32 %v667, 7
        %v669 = vsub.s32 %v666, %v668
        %v670 = vrot.slane %v660, %v669
        %v672 = vunpack.c.l.s4 1966171168
        %v673 = vunpack.c.0.s8 %v672
        %v674 = vlaneseq
        %v675 = vshrl.u32 %v674, 7
        %v676 = vsub.s32 %v673, %v675
        %v677 = vrot.slane %v661, %v676
        %v679 = vunpack.c.l.s4 1966171168
        %v680 = vunpack.c.0.s8 %v679
        %v681 = vlaneseq
        %v682 = vshrl.u32 %v681, 7
        %v683 = vsub.s32 %v680, %v682
        %v684 = vrot.slane %v662, %v683
        %v686 = vunpack.c.l.s4 1966171168
        %v687 = vunpack.c.0.s8 %v686
        %v688 = vlaneseq
        %v689 = vshrl.u32 %v688, 7
        %v690 = vsub.s32 %v687, %v689
        %v691 = vrot.slane %v663, %v690
        %v692 = vcombine.low %v670, %v684
        %v693 = vcombine.high %v670, %v684
        %v694 = vcombine.low %v677, %v691
        %v695 = vcombine.high %v677, %v691
        %v697 = vunpack.c.l.s4 1966171168
        %v698 = vunpack.c.0.s8 %v697
        %v699 = vlaneseq
        %v700 = vshrl.u32 %v699, 7
        %v701 = vsub.s32 %v698, %v700
        %v702 = vrot.slane %v692, %v701
        %v704 = vunpack.c.l.s4 1966171168
        %v705 = vunpack.c.0.s8 %v704
        %v706 = vlaneseq
        %v707 = vshrl.u32 %v706, 7
        %v708 = vsub.s32 %v705, %v707
        %v709 = vrot.slane %v694, %v708
        %v711 = vunpack.c.l.s4 1966171168
        %v712 = vunpack.c.0.s8 %v711
        %v713 = vlaneseq
        %v714 = vshrl.u32 %v713, 7
        %v715 = vsub.s32 %v712, %v714
        %v716 = vrot.slane %v693, %v715
        %v718 = vunpack.c.l.s4 1966171168
        %v719 = vunpack.c.0.s8 %v718
        %v720 = vlaneseq
        %v721 = vshrl.u32 %v720, 7
        %v722 = vsub.s32 %v719, %v721
        %v723 = vrot.slane %v695, %v722
        %v724 = vcombine.high %v702, %v702
        %v725 = vcombine.high %v709, %v709
        %v726 = vcombine.high %v716, %v716
        %v727 = vcombine.high %v723, %v723
        %v740 = vcombine.low %v496, %v497
        %v741 = vcombine.high %v496, %v497
        %v742 = vcombine.low %v498, %v499
        %v743 = vcombine.high %v498, %v499
        %v745 = vunpack.c.l.s4 1966171168
        %v746 = vunpack.c.0.s8 %v745
        %v747 = vlaneseq
        %v748 = vshrl.u32 %v747, 7
        %v749 = vsub.s32 %v746, %v748
        %v750 = vrot.slane %v740, %v749
        %v752 = vunpack.c.l.s4 1966171168
        %v753 = vunpack.c.0.s8 %v752
        %v754 = vlaneseq
        %v755 = vshrl.u32 %v754, 7
        %v756 = vsub.s32 %v753, %v755
        %v757 = vrot.slane %v741, %v756
        %v759 = vunpack.c.l.s4 1966171168
        %v760 = vunpack.c.0.s8 %v759
        %v761 = vlaneseq
        %v762 = vshrl.u32 %v761, 7
        %v763 = vsub.s32 %v760, %v762
        %v764 = vrot.slane %v742, %v763
        %v766 = vunpack.c.l.s4 1966171168
        %v767 = vunpack.c.0.s8 %v766
        %v768 = vlaneseq
        %v769 = vshrl.u32 %v768, 7
        %v770 = vsub.s32 %v767, %v769
        %v771 = vrot.slane %v743, %v770
        %v772 = vcombine.low %v750, %v764
        %v773 = vcombine.high %v750, %v764
        %v774 = vcombine.low %v757, %v771
        %v775 = vcombine.high %v757, %v771
        %v777 = vunpack.c.l.s4 1966171168
        %v778 = vunpack.c.0.s8 %v777
        %v779 = vlaneseq
        %v780 = vshrl.u32 %v779, 7
        %v781 = vsub.s32 %v778, %v780
        %v782 = vrot.slane %v772, %v781
        %v784 = vunpack.c.l.s4 1966171168
        %v785 = vunpack.c.0.s8 %v784
        %v786 = vlaneseq
        %v787 = vshrl.u32 %v786, 7
        %v788 = vsub.s32 %v785, %v787
        %v789 = vrot.slane %v774, %v788
        %v791 = vunpack.c.l.s4 1966171168
        %v792 = vunpack.c.0.s8 %v791
        %v793 = vlaneseq
        %v794 = vshrl.u32 %v793, 7
        %v795 = vsub.s32 %v792, %v794
        %v796 = vrot.slane %v773, %v795
        %v798 = vunpack.c.l.s4 1966171168
        %v799 = vunpack.c.0.s8 %v798
        %v800 = vlaneseq
        %v801 = vshrl.u32 %v800, 7
        %v802 = vsub.s32 %v799, %v801
        %v803 = vrot.slane %v775, %v802
        %v804 = vcombine.high %v782, %v782
        %v805 = vcombine.high %v789, %v789
        %v806 = vcombine.high %v796, %v796
        %v807 = vcombine.high %v803, %v803
        %v816 = vmul.f32 %v702, %v782
        %v817 = vmul.f32 %v702, %v796
        %v818 = vmul.f32 %v702, %v804
        %v819 = vmul.f32 %v702, %v806
        %v820 = vmul.f32 %v702, %v789
        %v821 = vmul.f32 %v702, %v803
        %v822 = vmul.f32 %v702, %v805
        %v823 = vmul.f32 %v702, %v807
        %v824 = vmul.f32 %v716, %v782
        %v825 = vmul.f32 %v716, %v796
        %v826 = vmul.f32 %v716, %v804
        %v827 = vmul.f32 %v716, %v806
        %v828 = vmul.f32 %v716, %v789
        %v829 = vmul.f32 %v716, %v803
        %v830 = vmul.f32 %v716, %v805
        %v831 = vmul.f32 %v716, %v807
        %v832 = vmul.f32 %v724, %v782
        %v833 = vmul.f32 %v724, %v796
        %v834 = vmul.f32 %v724, %v804
        %v835 = vmul.f32 %v724, %v806
        %v836 = vmul.f32 %v724, %v789
        %v837 = vmul.f32 %v724, %v803
        %v838 = vmul.f32 %v724, %v805
        %v839 = vmul.f32 %v724, %v807
        %v840 = vmul.f32 %v726, %v782
        %v841 = vmul.f32 %v726, %v796
        %v842 = vmul.f32 %v726, %v804
        %v843 = vmul.f32 %v726, %v806
        %v844 = vmul.f32 %v726, %v789
        %v845 = vmul.f32 %v726, %v803
        %v846 = vmul.f32 %v726, %v805
        %v847 = vmul.f32 %v726, %v807
        %v848 = vmul.f32 %v709, %v782
        %v849 = vmul.f32 %v709, %v796
        %v850 = vmul.f32 %v709, %v804
        %v851 = vmul.f32 %v709, %v806
        %v852 = vmul.f32 %v709, %v789
        %v853 = vmul.f32 %v709, %v803
        %v854 = vmul.f32 %v709, %v805
        %v855 = vmul.f32 %v709, %v807
        %v856 = vmul.f32 %v723, %v782
        %v857 = vmul.f32 %v723, %v796
        %v858 = vmul.f32 %v723, %v804
        %v859 = vmul.f32 %v723, %v806
        %v860 = vmul.f32 %v723, %v789
        %v861 = vmul.f32 %v723, %v803
        %v862 = vmul.f32 %v723, %v805
        %v863 = vmul.f32 %v723, %v807
        %v864 = vmul.f32 %v725, %v782
        %v865 = vmul.f32 %v725, %v796
        %v866 = vmul.f32 %v725, %v804
        %v867 = vmul.f32 %v725, %v806
        %v868 = vmul.f32 %v725, %v789
        %v869 = vmul.f32 %v725, %v803
        %v870 = vmul.f32 %v725, %v805
        %v871 = vmul.f32 %v725, %v807
        %v872 = vmul.f32 %v727, %v782
        %v873 = vmul.f32 %v727, %v796
        %v874 = vmul.f32 %v727, %v804
        %v875 = vmul.f32 %v727, %v806
        %v876 = vmul.f32 %v727, %v789
        %v877 = vmul.f32 %v727, %v803
        %v878 = vmul.f32 %v727, %v805
        %v879 = vmul.f32 %v727, %v807
        %v944 = vlaneseq
        %v945 = vshrl.u32 %v944, 7
        %v946 = vsub.s32 0, %v945
        %v947 = vrot.slane %v816, %v946
        %v948 = vlaneseq
        %v949 = vshrl.u32 %v948, 7
        %v950 = vsub.s32 1, %v949
        %v951 = vrot.slane %v816, %v950
        %v952 = vlaneseq
        %v953 = vshrl.u32 %v952, 7
        %v954 = vsub.s32 2, %v953
        %v955 = vrot.slane %v816, %v954
        %v956 = vlaneseq
        %v957 = vshrl.u32 %v956, 7
        %v958 = vsub.s32 3, %v957
        %v959 = vrot.slane %v816, %v958
        %v960 = vlaneseq
        %v961 = vshrl.u32 %v960, 7
        %v962 = vsub.s32 0, %v961
        %v963 = vrot.slane %v817, %v962
        %v964 = vlaneseq
        %v965 = vshrl.u32 %v964, 7
        %v966 = vsub.s32 1, %v965
        %v967 = vrot.slane %v817, %v966
        %v968 = vlaneseq
        %v969 = vshrl.u32 %v968, 7
        %v970 = vsub.s32 2, %v969
        %v971 = vrot.slane %v817, %v970
        %v972 = vlaneseq
        %v973 = vshrl.u32 %v972, 7
        %v974 = vsub.s32 3, %v973
        %v975 = vrot.slane %v817, %v974
        %v976 = vlaneseq
        %v977 = vshrl.u32 %v976, 7
        %v978 = vsub.s32 0, %v977
        %v979 = vrot.slane %v818, %v978
        %v980 = vlaneseq
        %v981 = vshrl.u32 %v980, 7
        %v982 = vsub.s32 1, %v981
        %v983 = vrot.slane %v818, %v982
        %v984 = vlaneseq
        %v985 = vshrl.u32 %v984, 7
        %v986 = vsub.s32 2, %v985
        %v987 = vrot.slane %v818, %v986
        %v988 = vlaneseq
        %v989 = vshrl.u32 %v988, 7
        %v990 = vsub.s32 3, %v989
        %v991 = vrot.slane %v818, %v990
        %v992 = vlaneseq
        %v993 = vshrl.u32 %v992, 7
        %v994 = vsub.s32 0, %v993
        %v995 = vrot.slane %v819, %v994
        %v996 = vlaneseq
        %v997 = vshrl.u32 %v996, 7
        %v998 = vsub.s32 1, %v997
        %v999 = vrot.slane %v819, %v998
        %v1000 = vlaneseq
        %v1001 = vshrl.u32 %v1000, 7
        %v1002 = vsub.s32 2, %v1001
        %v1003 = vrot.slane %v819, %v1002
        %v1004 = vlaneseq
        %v1005 = vshrl.u32 %v1004, 7
        %v1006 = vsub.s32 3, %v1005
        %v1007 = vrot.slane %v819, %v1006
        %v1008 = vlaneseq
        %v1009 = vshrl.u32 %v1008, 7
        %v1010 = vsub.s32 0, %v1009
        %v1011 = vrot.slane %v820, %v1010
        %v1012 = vlaneseq
        %v1013 = vshrl.u32 %v1012, 7
        %v1014 = vsub.s32 1, %v1013
        %v1015 = vrot.slane %v820, %v1014
        %v1016 = vlaneseq
        %v1017 = vshrl.u32 %v1016, 7
        %v1018 = vsub.s32 2, %v1017
        %v1019 = vrot.slane %v820, %v1018
        %v1020 = vlaneseq
        %v1021 = vshrl.u32 %v1020, 7
        %v1022 = vsub.s32 3, %v1021
        %v1023 = vrot.slane %v820, %v1022
        %v1024 = vlaneseq
        %v1025 = vshrl.u32 %v1024, 7
        %v1026 = vsub.s32 0, %v1025
        %v1027 = vrot.slane %v821, %v1026
        %v1028 = vlaneseq
        %v1029 = vshrl.u32 %v1028, 7
        %v1030 = vsub.s32 1, %v1029
        %v1031 = vrot.slane %v821, %v1030
        %v1032 = vlaneseq
        %v1033 = vshrl.u32 %v1032, 7
        %v1034 = vsub.s32 2, %v1033
        %v1035 = vrot.slane %v821, %v1034
        %v1036 = vlaneseq
        %v1037 = vshrl.u32 %v1036, 7
        %v1038 = vsub.s32 3, %v1037
        %v1039 = vrot.slane %v821, %v1038
        %v1040 = vlaneseq
        %v1041 = vshrl.u32 %v1040, 7
        %v1042 = vsub.s32 0, %v1041
        %v1043 = vrot.slane %v822, %v1042
        %v1044 = vlaneseq
        %v1045 = vshrl.u32 %v1044, 7
        %v1046 = vsub.s32 1, %v1045
        %v1047 = vrot.slane %v822, %v1046
        %v1048 = vlaneseq
        %v1049 = vshrl.u32 %v1048, 7
        %v1050 = vsub.s32 2, %v1049
        %v1051 = vrot.slane %v822, %v1050
        %v1052 = vlaneseq
        %v1053 = vshrl.u32 %v1052, 7
        %v1054 = vsub.s32 3, %v1053
        %v1055 = vrot.slane %v822, %v1054
        %v1056 = vlaneseq
        %v1057 = vshrl.u32 %v1056, 7
        %v1058 = vsub.s32 0, %v1057
        %v1059 = vrot.slane %v823, %v1058
        %v1060 = vlaneseq
        %v1061 = vshrl.u32 %v1060, 7
        %v1062 = vsub.s32 1, %v1061
        %v1063 = vrot.slane %v823, %v1062
        %v1064 = vlaneseq
        %v1065 = vshrl.u32 %v1064, 7
        %v1066 = vsub.s32 2, %v1065
        %v1067 = vrot.slane %v823, %v1066
        %v1068 = vlaneseq
        %v1069 = vshrl.u32 %v1068, 7
        %v1070 = vsub.s32 3, %v1069
        %v1071 = vrot.slane %v823, %v1070
        %v1072 = vlaneseq
        %v1073 = vshrl.u32 %v1072, 7
        %v1074 = vsub.s32 0, %v1073
        %v1075 = vrot.slane %v824, %v1074
        %v1076 = vlaneseq
        %v1077 = vshrl.u32 %v1076, 7
        %v1078 = vsub.s32 1, %v1077
        %v1079 = vrot.slane %v824, %v1078
        %v1080 = vlaneseq
        %v1081 = vshrl.u32 %v1080, 7
        %v1082 = vsub.s32 2, %v1081
        %v1083 = vrot.slane %v824, %v1082
        %v1084 = vlaneseq
        %v1085 = vshrl.u32 %v1084, 7
        %v1086 = vsub.s32 3, %v1085
        %v1087 = vrot.slane %v824, %v1086
        %v1088 = vlaneseq
        %v1089 = vshrl.u32 %v1088, 7
        %v1090 = vsub.s32 0, %v1089
        %v1091 = vrot.slane %v825, %v1090
        %v1092 = vlaneseq
        %v1093 = vshrl.u32 %v1092, 7
        %v1094 = vsub.s32 1, %v1093
        %v1095 = vrot.slane %v825, %v1094
        %v1096 = vlaneseq
        %v1097 = vshrl.u32 %v1096, 7
        %v1098 = vsub.s32 2, %v1097
        %v1099 = vrot.slane %v825, %v1098
        %v1100 = vlaneseq
        %v1101 = vshrl.u32 %v1100, 7
        %v1102 = vsub.s32 3, %v1101
        %v1103 = vrot.slane %v825, %v1102
        %v1104 = vlaneseq
        %v1105 = vshrl.u32 %v1104, 7
        %v1106 = vsub.s32 0, %v1105
        %v1107 = vrot.slane %v826, %v1106
        %v1108 = vlaneseq
        %v1109 = vshrl.u32 %v1108, 7
        %v1110 = vsub.s32 1, %v1109
        %v1111 = vrot.slane %v826, %v1110
        %v1112 = vlaneseq
        %v1113 = vshrl.u32 %v1112, 7
        %v1114 = vsub.s32 2, %v1113
        %v1115 = vrot.slane %v826, %v1114
        %v1116 = vlaneseq
        %v1117 = vshrl.u32 %v1116, 7
        %v1118 = vsub.s32 3, %v1117
        %v1119 = vrot.slane %v826, %v1118
        %v1120 = vlaneseq
        %v1121 = vshrl.u32 %v1120, 7
        %v1122 = vsub.s32 0, %v1121
        %v1123 = vrot.slane %v827, %v1122
        %v1124 = vlaneseq
        %v1125 = vshrl.u32 %v1124, 7
        %v1126 = vsub.s32 1, %v1125
        %v1127 = vrot.slane %v827, %v1126
        %v1128 = vlaneseq
        %v1129 = vshrl.u32 %v1128, 7
        %v1130 = vsub.s32 2, %v1129
        %v1131 = vrot.slane %v827, %v1130
        %v1132 = vlaneseq
        %v1133 = vshrl.u32 %v1132, 7
        %v1134 = vsub.s32 3, %v1133
        %v1135 = vrot.slane %v827, %v1134
        %v1136 = vlaneseq
        %v1137 = vshrl.u32 %v1136, 7
        %v1138 = vsub.s32 0, %v1137
        %v1139 = vrot.slane %v828, %v1138
        %v1140 = vlaneseq
        %v1141 = vshrl.u32 %v1140, 7
        %v1142 = vsub.s32 1, %v1141
        %v1143 = vrot.slane %v828, %v1142
        %v1144 = vlaneseq
        %v1145 = vshrl.u32 %v1144, 7
        %v1146 = vsub.s32 2, %v1145
        %v1147 = vrot.slane %v828, %v1146
        %v1148 = vlaneseq
        %v1149 = vshrl.u32 %v1148, 7
        %v1150 = vsub.s32 3, %v1149
        %v1151 = vrot.slane %v828, %v1150
        %v1152 = vlaneseq
        %v1153 = vshrl.u32 %v1152, 7
        %v1154 = vsub.s32 0, %v1153
        %v1155 = vrot.slane %v829, %v1154
        %v1156 = vlaneseq
        %v1157 = vshrl.u32 %v1156, 7
        %v1158 = vsub.s32 1, %v1157
        %v1159 = vrot.slane %v829, %v1158
        %v1160 = vlaneseq
        %v1161 = vshrl.u32 %v1160, 7
        %v1162 = vsub.s32 2, %v1161
        %v1163 = vrot.slane %v829, %v1162
        %v1164 = vlaneseq
        %v1165 = vshrl.u32 %v1164, 7
        %v1166 = vsub.s32 3, %v1165
        %v1167 = vrot.slane %v829, %v1166
        %v1168 = vlaneseq
        %v1169 = vshrl.u32 %v1168, 7
        %v1170 = vsub.s32 0, %v1169
        %v1171 = vrot.slane %v830, %v1170
        %v1172 = vlaneseq
        %v1173 = vshrl.u32 %v1172, 7
        %v1174 = vsub.s32 1, %v1173
        %v1175 = vrot.slane %v830, %v1174
        %v1176 = vlaneseq
        %v1177 = vshrl.u32 %v1176, 7
        %v1178 = vsub.s32 2, %v1177
        %v1179 = vrot.slane %v830, %v1178
        %v1180 = vlaneseq
        %v1181 = vshrl.u32 %v1180, 7
        %v1182 = vsub.s32 3, %v1181
        %v1183 = vrot.slane %v830, %v1182
        %v1184 = vlaneseq
        %v1185 = vshrl.u32 %v1184, 7
        %v1186 = vsub.s32 0, %v1185
        %v1187 = vrot.slane %v831, %v1186
        %v1188 = vlaneseq
        %v1189 = vshrl.u32 %v1188, 7
        %v1190 = vsub.s32 1, %v1189
        %v1191 = vrot.slane %v831, %v1190
        %v1192 = vlaneseq
        %v1193 = vshrl.u32 %v1192, 7
        %v1194 = vsub.s32 2, %v1193
        %v1195 = vrot.slane %v831, %v1194
        %v1196 = vlaneseq
        %v1197 = vshrl.u32 %v1196, 7
        %v1198 = vsub.s32 3, %v1197
        %v1199 = vrot.slane %v831, %v1198
        %v1200 = vlaneseq
        %v1201 = vshrl.u32 %v1200, 7
        %v1202 = vsub.s32 0, %v1201
        %v1203 = vrot.slane %v832, %v1202
        %v1204 = vlaneseq
        %v1205 = vshrl.u32 %v1204, 7
        %v1206 = vsub.s32 1, %v1205
        %v1207 = vrot.slane %v832, %v1206
        %v1208 = vlaneseq
        %v1209 = vshrl.u32 %v1208, 7
        %v1210 = vsub.s32 2, %v1209
        %v1211 = vrot.slane %v832, %v1210
        %v1212 = vlaneseq
        %v1213 = vshrl.u32 %v1212, 7
        %v1214 = vsub.s32 3, %v1213
        %v1215 = vrot.slane %v832, %v1214
        %v1216 = vlaneseq
        %v1217 = vshrl.u32 %v1216, 7
        %v1218 = vsub.s32 0, %v1217
        %v1219 = vrot.slane %v833, %v1218
        %v1220 = vlaneseq
        %v1221 = vshrl.u32 %v1220, 7
        %v1222 = vsub.s32 1, %v1221
        %v1223 = vrot.slane %v833, %v1222
        %v1224 = vlaneseq
        %v1225 = vshrl.u32 %v1224, 7
        %v1226 = vsub.s32 2, %v1225
        %v1227 = vrot.slane %v833, %v1226
        %v1228 = vlaneseq
        %v1229 = vshrl.u32 %v1228, 7
        %v1230 = vsub.s32 3, %v1229
        %v1231 = vrot.slane %v833, %v1230
        %v1232 = vlaneseq
        %v1233 = vshrl.u32 %v1232, 7
        %v1234 = vsub.s32 0, %v1233
        %v1235 = vrot.slane %v834, %v1234
        %v1236 = vlaneseq
        %v1237 = vshrl.u32 %v1236, 7
        %v1238 = vsub.s32 1, %v1237
        %v1239 = vrot.slane %v834, %v1238
        %v1240 = vlaneseq
        %v1241 = vshrl.u32 %v1240, 7
        %v1242 = vsub.s32 2, %v1241
        %v1243 = vrot.slane %v834, %v1242
        %v1244 = vlaneseq
        %v1245 = vshrl.u32 %v1244, 7
        %v1246 = vsub.s32 3, %v1245
        %v1247 = vrot.slane %v834, %v1246
        %v1248 = vlaneseq
        %v1249 = vshrl.u32 %v1248, 7
        %v1250 = vsub.s32 0, %v1249
        %v1251 = vrot.slane %v835, %v1250
        %v1252 = vlaneseq
        %v1253 = vshrl.u32 %v1252, 7
        %v1254 = vsub.s32 1, %v1253
        %v1255 = vrot.slane %v835, %v1254
        %v1256 = vlaneseq
        %v1257 = vshrl.u32 %v1256, 7
        %v1258 = vsub.s32 2, %v1257
        %v1259 = vrot.slane %v835, %v1258
        %v1260 = vlaneseq
        %v1261 = vshrl.u32 %v1260, 7
        %v1262 = vsub.s32 3, %v1261
        %v1263 = vrot.slane %v835, %v1262
        %v1264 = vlaneseq
        %v1265 = vshrl.u32 %v1264, 7
        %v1266 = vsub.s32 0, %v1265
        %v1267 = vrot.slane %v836, %v1266
        %v1268 = vlaneseq
        %v1269 = vshrl.u32 %v1268, 7
        %v1270 = vsub.s32 1, %v1269
        %v1271 = vrot.slane %v836, %v1270
        %v1272 = vlaneseq
        %v1273 = vshrl.u32 %v1272, 7
        %v1274 = vsub.s32 2, %v1273
        %v1275 = vrot.slane %v836, %v1274
        %v1276 = vlaneseq
        %v1277 = vshrl.u32 %v1276, 7
        %v1278 = vsub.s32 3, %v1277
        %v1279 = vrot.slane %v836, %v1278
        %v1280 = vlaneseq
        %v1281 = vshrl.u32 %v1280, 7
        %v1282 = vsub.s32 0, %v1281
        %v1283 = vrot.slane %v837, %v1282
        %v1284 = vlaneseq
        %v1285 = vshrl.u32 %v1284, 7
        %v1286 = vsub.s32 1, %v1285
        %v1287 = vrot.slane %v837, %v1286
        %v1288 = vlaneseq
        %v1289 = vshrl.u32 %v1288, 7
        %v1290 = vsub.s32 2, %v1289
        %v1291 = vrot.slane %v837, %v1290
        %v1292 = vlaneseq
        %v1293 = vshrl.u32 %v1292, 7
        %v1294 = vsub.s32 3, %v1293
        %v1295 = vrot.slane %v837, %v1294
        %v1296 = vlaneseq
        %v1297 = vshrl.u32 %v1296, 7
        %v1298 = vsub.s32 0, %v1297
        %v1299 = vrot.slane %v838, %v1298
        %v1300 = vlaneseq
        %v1301 = vshrl.u32 %v1300, 7
        %v1302 = vsub.s32 1, %v1301
        %v1303 = vrot.slane %v838, %v1302
        %v1304 = vlaneseq
        %v1305 = vshrl.u32 %v1304, 7
        %v1306 = vsub.s32 2, %v1305
        %v1307 = vrot.slane %v838, %v1306
        %v1308 = vlaneseq
        %v1309 = vshrl.u32 %v1308, 7
        %v1310 = vsub.s32 3, %v1309
        %v1311 = vrot.slane %v838, %v1310
        %v1312 = vlaneseq
        %v1313 = vshrl.u32 %v1312, 7
        %v1314 = vsub.s32 0, %v1313
        %v1315 = vrot.slane %v839, %v1314
        %v1316 = vlaneseq
        %v1317 = vshrl.u32 %v1316, 7
        %v1318 = vsub.s32 1, %v1317
        %v1319 = vrot.slane %v839, %v1318
        %v1320 = vlaneseq
        %v1321 = vshrl.u32 %v1320, 7
        %v1322 = vsub.s32 2, %v1321
        %v1323 = vrot.slane %v839, %v1322
        %v1324 = vlaneseq
        %v1325 = vshrl.u32 %v1324, 7
        %v1326 = vsub.s32 3, %v1325
        %v1327 = vrot.slane %v839, %v1326
        %v1328 = vlaneseq
        %v1329 = vshrl.u32 %v1328, 7
        %v1330 = vsub.s32 0, %v1329
        %v1331 = vrot.slane %v840, %v1330
        %v1332 = vlaneseq
        %v1333 = vshrl.u32 %v1332, 7
        %v1334 = vsub.s32 1, %v1333
        %v1335 = vrot.slane %v840, %v1334
        %v1336 = vlaneseq
        %v1337 = vshrl.u32 %v1336, 7
        %v1338 = vsub.s32 2, %v1337
        %v1339 = vrot.slane %v840, %v1338
        %v1340 = vlaneseq
        %v1341 = vshrl.u32 %v1340, 7
        %v1342 = vsub.s32 3, %v1341
        %v1343 = vrot.slane %v840, %v1342
        %v1344 = vlaneseq
        %v1345 = vshrl.u32 %v1344, 7
        %v1346 = vsub.s32 0, %v1345
        %v1347 = vrot.slane %v841, %v1346
        %v1348 = vlaneseq
        %v1349 = vshrl.u32 %v1348, 7
        %v1350 = vsub.s32 1, %v1349
        %v1351 = vrot.slane %v841, %v1350
        %v1352 = vlaneseq
        %v1353 = vshrl.u32 %v1352, 7
        %v1354 = vsub.s32 2, %v1353
        %v1355 = vrot.slane %v841, %v1354
        %v1356 = vlaneseq
        %v1357 = vshrl.u32 %v1356, 7
        %v1358 = vsub.s32 3, %v1357
        %v1359 = vrot.slane %v841, %v1358
        %v1360 = vlaneseq
        %v1361 = vshrl.u32 %v1360, 7
        %v1362 = vsub.s32 0, %v1361
        %v1363 = vrot.slane %v842, %v1362
        %v1364 = vlaneseq
        %v1365 = vshrl.u32 %v1364, 7
        %v1366 = vsub.s32 1, %v1365
        %v1367 = vrot.slane %v842, %v1366
        %v1368 = vlaneseq
        %v1369 = vshrl.u32 %v1368, 7
        %v1370 = vsub.s32 2, %v1369
        %v1371 = vrot.slane %v842, %v1370
        %v1372 = vlaneseq
        %v1373 = vshrl.u32 %v1372, 7
        %v1374 = vsub.s32 3, %v1373
        %v1375 = vrot.slane %v842, %v1374
        %v1376 = vlaneseq
        %v1377 = vshrl.u32 %v1376, 7
        %v1378 = vsub.s32 0, %v1377
        %v1379 = vrot.slane %v843, %v1378
        %v1380 = vlaneseq
        %v1381 = vshrl.u32 %v1380, 7
        %v1382 = vsub.s32 1, %v1381
        %v1383 = vrot.slane %v843, %v1382
        %v1384 = vlaneseq
        %v1385 = vshrl.u32 %v1384, 7
        %v1386 = vsub.s32 2, %v1385
        %v1387 = vrot.slane %v843, %v1386
        %v1388 = vlaneseq
        %v1389 = vshrl.u32 %v1388, 7
        %v1390 = vsub.s32 3, %v1389
        %v1391 = vrot.slane %v843, %v1390
        %v1392 = vlaneseq
        %v1393 = vshrl.u32 %v1392, 7
        %v1394 = vsub.s32 0, %v1393
        %v1395 = vrot.slane %v844, %v1394
        %v1396 = vlaneseq
        %v1397 = vshrl.u32 %v1396, 7
        %v1398 = vsub.s32 1, %v1397
        %v1399 = vrot.slane %v844, %v1398
        %v1400 = vlaneseq
        %v1401 = vshrl.u32 %v1400, 7
        %v1402 = vsub.s32 2, %v1401
        %v1403 = vrot.slane %v844, %v1402
        %v1404 = vlaneseq
        %v1405 = vshrl.u32 %v1404, 7
        %v1406 = vsub.s32 3, %v1405
        %v1407 = vrot.slane %v844, %v1406
        %v1408 = vlaneseq
        %v1409 = vshrl.u32 %v1408, 7
        %v1410 = vsub.s32 0, %v1409
        %v1411 = vrot.slane %v845, %v1410
        %v1412 = vlaneseq
        %v1413 = vshrl.u32 %v1412, 7
        %v1414 = vsub.s32 1, %v1413
        %v1415 = vrot.slane %v845, %v1414
        %v1416 = vlaneseq
        %v1417 = vshrl.u32 %v1416, 7
        %v1418 = vsub.s32 2, %v1417
        %v1419 = vrot.slane %v845, %v1418
        %v1420 = vlaneseq
        %v1421 = vshrl.u32 %v1420, 7
        %v1422 = vsub.s32 3, %v1421
        %v1423 = vrot.slane %v845, %v1422
        %v1424 = vlaneseq
        %v1425 = vshrl.u32 %v1424, 7
        %v1426 = vsub.s32 0, %v1425
        %v1427 = vrot.slane %v846, %v1426
        %v1428 = vlaneseq
        %v1429 = vshrl.u32 %v1428, 7
        %v1430 = vsub.s32 1, %v1429
        %v1431 = vrot.slane %v846, %v1430
        %v1432 = vlaneseq
        %v1433 = vshrl.u32 %v1432, 7
        %v1434 = vsub.s32 2, %v1433
        %v1435 = vrot.slane %v846, %v1434
        %v1436 = vlaneseq
        %v1437 = vshrl.u32 %v1436, 7
        %v1438 = vsub.s32 3, %v1437
        %v1439 = vrot.slane %v846, %v1438
        %v1440 = vlaneseq
        %v1441 = vshrl.u32 %v1440, 7
        %v1442 = vsub.s32 0, %v1441
        %v1443 = vrot.slane %v847, %v1442
        %v1444 = vlaneseq
        %v1445 = vshrl.u32 %v1444, 7
        %v1446 = vsub.s32 1, %v1445
        %v1447 = vrot.slane %v847, %v1446
        %v1448 = vlaneseq
        %v1449 = vshrl.u32 %v1448, 7
        %v1450 = vsub.s32 2, %v1449
        %v1451 = vrot.slane %v847, %v1450
        %v1452 = vlaneseq
        %v1453 = vshrl.u32 %v1452, 7
        %v1454 = vsub.s32 3, %v1453
        %v1455 = vrot.slane %v847, %v1454
        %v1456 = vlaneseq
        %v1457 = vshrl.u32 %v1456, 7
        %v1458 = vsub.s32 0, %v1457
        %v1459 = vrot.slane %v848, %v1458
        %v1460 = vlaneseq
        %v1461 = vshrl.u32 %v1460, 7
        %v1462 = vsub.s32 1, %v1461
        %v1463 = vrot.slane %v848, %v1462
        %v1464 = vlaneseq
        %v1465 = vshrl.u32 %v1464, 7
        %v1466 = vsub.s32 2, %v1465
        %v1467 = vrot.slane %v848, %v1466
        %v1468 = vlaneseq
        %v1469 = vshrl.u32 %v1468, 7
        %v1470 = vsub.s32 3, %v1469
        %v1471 = vrot.slane %v848, %v1470
        %v1472 = vlaneseq
        %v1473 = vshrl.u32 %v1472, 7
        %v1474 = vsub.s32 0, %v1473
        %v1475 = vrot.slane %v849, %v1474
        %v1476 = vlaneseq
        %v1477 = vshrl.u32 %v1476, 7
        %v1478 = vsub.s32 1, %v1477
        %v1479 = vrot.slane %v849, %v1478
        %v1480 = vlaneseq
        %v1481 = vshrl.u32 %v1480, 7
        %v1482 = vsub.s32 2, %v1481
        %v1483 = vrot.slane %v849, %v1482
        %v1484 = vlaneseq
        %v1485 = vshrl.u32 %v1484, 7
        %v1486 = vsub.s32 3, %v1485
        %v1487 = vrot.slane %v849, %v1486
        %v1488 = vlaneseq
        %v1489 = vshrl.u32 %v1488, 7
        %v1490 = vsub.s32 0, %v1489
        %v1491 = vrot.slane %v850, %v1490
        %v1492 = vlaneseq
        %v1493 = vshrl.u32 %v1492, 7
        %v1494 = vsub.s32 1, %v1493
        %v1495 = vrot.slane %v850, %v1494
        %v1496 = vlaneseq
        %v1497 = vshrl.u32 %v1496, 7
        %v1498 = vsub.s32 2, %v1497
        %v1499 = vrot.slane %v850, %v1498
        %v1500 = vlaneseq
        %v1501 = vshrl.u32 %v1500, 7
        %v1502 = vsub.s32 3, %v1501
        %v1503 = vrot.slane %v850, %v1502
        %v1504 = vlaneseq
        %v1505 = vshrl.u32 %v1504, 7
        %v1506 = vsub.s32 0, %v1505
        %v1507 = vrot.slane %v851, %v1506
        %v1508 = vlaneseq
        %v1509 = vshrl.u32 %v1508, 7
        %v1510 = vsub.s32 1, %v1509
        %v1511 = vrot.slane %v851, %v1510
        %v1512 = vlaneseq
        %v1513 = vshrl.u32 %v1512, 7
        %v1514 = vsub.s32 2, %v1513
        %v1515 = vrot.slane %v851, %v1514
        %v1516 = vlaneseq
        %v1517 = vshrl.u32 %v1516, 7
        %v1518 = vsub.s32 3, %v1517
        %v1519 = vrot.slane %v851, %v1518
        %v1520 = vlaneseq
        %v1521 = vshrl.u32 %v1520, 7
        %v1522 = vsub.s32 0, %v1521
        %v1523 = vrot.slane %v852, %v1522
        %v1524 = vlaneseq
        %v1525 = vshrl.u32 %v1524, 7
        %v1526 = vsub.s32 1, %v1525
        %v1527 = vrot.slane %v852, %v1526
        %v1528 = vlaneseq
        %v1529 = vshrl.u32 %v1528, 7
        %v1530 = vsub.s32 2, %v1529
        %v1531 = vrot.slane %v852, %v1530
        %v1532 = vlaneseq
        %v1533 = vshrl.u32 %v1532, 7
        %v1534 = vsub.s32 3, %v1533
        %v1535 = vrot.slane %v852, %v1534
        %v1536 = vlaneseq
        %v1537 = vshrl.u32 %v1536, 7
        %v1538 = vsub.s32 0, %v1537
        %v1539 = vrot.slane %v853, %v1538
        %v1540 = vlaneseq
        %v1541 = vshrl.u32 %v1540, 7
        %v1542 = vsub.s32 1, %v1541
        %v1543 = vrot.slane %v853, %v1542
        %v1544 = vlaneseq
        %v1545 = vshrl.u32 %v1544, 7
        %v1546 = vsub.s32 2, %v1545
        %v1547 = vrot.slane %v853, %v1546
        %v1548 = vlaneseq
        %v1549 = vshrl.u32 %v1548, 7
        %v1550 = vsub.s32 3, %v1549
        %v1551 = vrot.slane %v853, %v1550
        %v1552 = vlaneseq
        %v1553 = vshrl.u32 %v1552, 7
        %v1554 = vsub.s32 0, %v1553
        %v1555 = vrot.slane %v854, %v1554
        %v1556 = vlaneseq
        %v1557 = vshrl.u32 %v1556, 7
        %v1558 = vsub.s32 1, %v1557
        %v1559 = vrot.slane %v854, %v1558
        %v1560 = vlaneseq
        %v1561 = vshrl.u32 %v1560, 7
        %v1562 = vsub.s32 2, %v1561
        %v1563 = vrot.slane %v854, %v1562
        %v1564 = vlaneseq
        %v1565 = vshrl.u32 %v1564, 7
        %v1566 = vsub.s32 3, %v1565
        %v1567 = vrot.slane %v854, %v1566
        %v1568 = vlaneseq
        %v1569 = vshrl.u32 %v1568, 7
        %v1570 = vsub.s32 0, %v1569
        %v1571 = vrot.slane %v855, %v1570
        %v1572 = vlaneseq
        %v1573 = vshrl.u32 %v1572, 7
        %v1574 = vsub.s32 1, %v1573
        %v1575 = vrot.slane %v855, %v1574
        %v1576 = vlaneseq
        %v1577 = vshrl.u32 %v1576, 7
        %v1578 = vsub.s32 2, %v1577
        %v1579 = vrot.slane %v855, %v1578
        %v1580 = vlaneseq
        %v1581 = vshrl.u32 %v1580, 7
        %v1582 = vsub.s32 3, %v1581
        %v1583 = vrot.slane %v855, %v1582
        %v1584 = vlaneseq
        %v1585 = vshrl.u32 %v1584, 7
        %v1586 = vsub.s32 0, %v1585
        %v1587 = vrot.slane %v856, %v1586
        %v1588 = vlaneseq
        %v1589 = vshrl.u32 %v1588, 7
        %v1590 = vsub.s32 1, %v1589
        %v1591 = vrot.slane %v856, %v1590
        %v1592 = vlaneseq
        %v1593 = vshrl.u32 %v1592, 7
        %v1594 = vsub.s32 2, %v1593
        %v1595 = vrot.slane %v856, %v1594
        %v1596 = vlaneseq
        %v1597 = vshrl.u32 %v1596, 7
        %v1598 = vsub.s32 3, %v1597
        %v1599 = vrot.slane %v856, %v1598
        %v1600 = vlaneseq
        %v1601 = vshrl.u32 %v1600, 7
        %v1602 = vsub.s32 0, %v1601
        %v1603 = vrot.slane %v857, %v1602
        %v1604 = vlaneseq
        %v1605 = vshrl.u32 %v1604, 7
        %v1606 = vsub.s32 1, %v1605
        %v1607 = vrot.slane %v857, %v1606
        %v1608 = vlaneseq
        %v1609 = vshrl.u32 %v1608, 7
        %v1610 = vsub.s32 2, %v1609
        %v1611 = vrot.slane %v857, %v1610
        %v1612 = vlaneseq
        %v1613 = vshrl.u32 %v1612, 7
        %v1614 = vsub.s32 3, %v1613
        %v1615 = vrot.slane %v857, %v1614
        %v1616 = vlaneseq
        %v1617 = vshrl.u32 %v1616, 7
        %v1618 = vsub.s32 0, %v1617
        %v1619 = vrot.slane %v858, %v1618
        %v1620 = vlaneseq
        %v1621 = vshrl.u32 %v1620, 7
        %v1622 = vsub.s32 1, %v1621
        %v1623 = vrot.slane %v858, %v1622
        %v1624 = vlaneseq
        %v1625 = vshrl.u32 %v1624, 7
        %v1626 = vsub.s32 2, %v1625
        %v1627 = vrot.slane %v858, %v1626
        %v1628 = vlaneseq
        %v1629 = vshrl.u32 %v1628, 7
        %v1630 = vsub.s32 3, %v1629
        %v1631 = vrot.slane %v858, %v1630
        %v1632 = vlaneseq
        %v1633 = vshrl.u32 %v1632, 7
        %v1634 = vsub.s32 0, %v1633
        %v1635 = vrot.slane %v859, %v1634
        %v1636 = vlaneseq
        %v1637 = vshrl.u32 %v1636, 7
        %v1638 = vsub.s32 1, %v1637
        %v1639 = vrot.slane %v859, %v1638
        %v1640 = vlaneseq
        %v1641 = vshrl.u32 %v1640, 7
        %v1642 = vsub.s32 2, %v1641
        %v1643 = vrot.slane %v859, %v1642
        %v1644 = vlaneseq
        %v1645 = vshrl.u32 %v1644, 7
        %v1646 = vsub.s32 3, %v1645
        %v1647 = vrot.slane %v859, %v1646
        %v1648 = vlaneseq
        %v1649 = vshrl.u32 %v1648, 7
        %v1650 = vsub.s32 0, %v1649
        %v1651 = vrot.slane %v860, %v1650
        %v1652 = vlaneseq
        %v1653 = vshrl.u32 %v1652, 7
        %v1654 = vsub.s32 1, %v1653
        %v1655 = vrot.slane %v860, %v1654
        %v1656 = vlaneseq
        %v1657 = vshrl.u32 %v1656, 7
        %v1658 = vsub.s32 2, %v1657
        %v1659 = vrot.slane %v860, %v1658
        %v1660 = vlaneseq
        %v1661 = vshrl.u32 %v1660, 7
        %v1662 = vsub.s32 3, %v1661
        %v1663 = vrot.slane %v860, %v1662
        %v1664 = vlaneseq
        %v1665 = vshrl.u32 %v1664, 7
        %v1666 = vsub.s32 0, %v1665
        %v1667 = vrot.slane %v861, %v1666
        %v1668 = vlaneseq
        %v1669 = vshrl.u32 %v1668, 7
        %v1670 = vsub.s32 1, %v1669
        %v1671 = vrot.slane %v861, %v1670
        %v1672 = vlaneseq
        %v1673 = vshrl.u32 %v1672, 7
        %v1674 = vsub.s32 2, %v1673
        %v1675 = vrot.slane %v861, %v1674
        %v1676 = vlaneseq
        %v1677 = vshrl.u32 %v1676, 7
        %v1678 = vsub.s32 3, %v1677
        %v1679 = vrot.slane %v861, %v1678
        %v1680 = vlaneseq
        %v1681 = vshrl.u32 %v1680, 7
        %v1682 = vsub.s32 0, %v1681
        %v1683 = vrot.slane %v862, %v1682
        %v1684 = vlaneseq
        %v1685 = vshrl.u32 %v1684, 7
        %v1686 = vsub.s32 1, %v1685
        %v1687 = vrot.slane %v862, %v1686
        %v1688 = vlaneseq
        %v1689 = vshrl.u32 %v1688, 7
        %v1690 = vsub.s32 2, %v1689
        %v1691 = vrot.slane %v862, %v1690
        %v1692 = vlaneseq
        %v1693 = vshrl.u32 %v1692, 7
        %v1694 = vsub.s32 3, %v1693
        %v1695 = vrot.slane %v862, %v1694
        %v1696 = vlaneseq
        %v1697 = vshrl.u32 %v1696, 7
        %v1698 = vsub.s32 0, %v1697
        %v1699 = vrot.slane %v863, %v1698
        %v1700 = vlaneseq
        %v1701 = vshrl.u32 %v1700, 7
        %v1702 = vsub.s32 1, %v1701
        %v1703 = vrot.slane %v863, %v1702
        %v1704 = vlaneseq
        %v1705 = vshrl.u32 %v1704, 7
        %v1706 = vsub.s32 2, %v1705
        %v1707 = vrot.slane %v863, %v1706
        %v1708 = vlaneseq
        %v1709 = vshrl.u32 %v1708, 7
        %v1710 = vsub.s32 3, %v1709
        %v1711 = vrot.slane %v863, %v1710
        %v1712 = vlaneseq
        %v1713 = vshrl.u32 %v1712, 7
        %v1714 = vsub.s32 0, %v1713
        %v1715 = vrot.slane %v864, %v1714
        %v1716 = vlaneseq
        %v1717 = vshrl.u32 %v1716, 7
        %v1718 = vsub.s32 1, %v1717
        %v1719 = vrot.slane %v864, %v1718
        %v1720 = vlaneseq
        %v1721 = vshrl.u32 %v1720, 7
        %v1722 = vsub.s32 2, %v1721
        %v1723 = vrot.slane %v864, %v1722
        %v1724 = vlaneseq
        %v1725 = vshrl.u32 %v1724, 7
        %v1726 = vsub.s32 3, %v1725
        %v1727 = vrot.slane %v864, %v1726
        %v1728 = vlaneseq
        %v1729 = vshrl.u32 %v1728, 7
        %v1730 = vsub.s32 0, %v1729
        %v1731 = vrot.slane %v865, %v1730
        %v1732 = vlaneseq
        %v1733 = vshrl.u32 %v1732, 7
        %v1734 = vsub.s32 1, %v1733
        %v1735 = vrot.slane %v865, %v1734
        %v1736 = vlaneseq
        %v1737 = vshrl.u32 %v1736, 7
        %v1738 = vsub.s32 2, %v1737
        %v1739 = vrot.slane %v865, %v1738
        %v1740 = vlaneseq
        %v1741 = vshrl.u32 %v1740, 7
        %v1742 = vsub.s32 3, %v1741
        %v1743 = vrot.slane %v865, %v1742
        %v1744 = vlaneseq
        %v1745 = vshrl.u32 %v1744, 7
        %v1746 = vsub.s32 0, %v1745
        %v1747 = vrot.slane %v866, %v1746
        %v1748 = vlaneseq
        %v1749 = vshrl.u32 %v1748, 7
        %v1750 = vsub.s32 1, %v1749
        %v1751 = vrot.slane %v866, %v1750
        %v1752 = vlaneseq
        %v1753 = vshrl.u32 %v1752, 7
        %v1754 = vsub.s32 2, %v1753
        %v1755 = vrot.slane %v866, %v1754
        %v1756 = vlaneseq
        %v1757 = vshrl.u32 %v1756, 7
        %v1758 = vsub.s32 3, %v1757
        %v1759 = vrot.slane %v866, %v1758
        %v1760 = vlaneseq
        %v1761 = vshrl.u32 %v1760, 7
        %v1762 = vsub.s32 0, %v1761
        %v1763 = vrot.slane %v867, %v1762
        %v1764 = vlaneseq
        %v1765 = vshrl.u32 %v1764, 7
        %v1766 = vsub.s32 1, %v1765
        %v1767 = vrot.slane %v867, %v1766
        %v1768 = vlaneseq
        %v1769 = vshrl.u32 %v1768, 7
        %v1770 = vsub.s32 2, %v1769
        %v1771 = vrot.slane %v867, %v1770
        %v1772 = vlaneseq
        %v1773 = vshrl.u32 %v1772, 7
        %v1774 = vsub.s32 3, %v1773
        %v1775 = vrot.slane %v867, %v1774
        %v1776 = vlaneseq
        %v1777 = vshrl.u32 %v1776, 7
        %v1778 = vsub.s32 0, %v1777
        %v1779 = vrot.slane %v868, %v1778
        %v1780 = vlaneseq
        %v1781 = vshrl.u32 %v1780, 7
        %v1782 = vsub.s32 1, %v1781
        %v1783 = vrot.slane %v868, %v1782
        %v1784 = vlaneseq
        %v1785 = vshrl.u32 %v1784, 7
        %v1786 = vsub.s32 2, %v1785
        %v1787 = vrot.slane %v868, %v1786
        %v1788 = vlaneseq
        %v1789 = vshrl.u32 %v1788, 7
        %v1790 = vsub.s32 3, %v1789
        %v1791 = vrot.slane %v868, %v1790
        %v1792 = vlaneseq
        %v1793 = vshrl.u32 %v1792, 7
        %v1794 = vsub.s32 0, %v1793
        %v1795 = vrot.slane %v869, %v1794
        %v1796 = vlaneseq
        %v1797 = vshrl.u32 %v1796, 7
        %v1798 = vsub.s32 1, %v1797
        %v1799 = vrot.slane %v869, %v1798
        %v1800 = vlaneseq
        %v1801 = vshrl.u32 %v1800, 7
        %v1802 = vsub.s32 2, %v1801
        %v1803 = vrot.slane %v869, %v1802
        %v1804 = vlaneseq
        %v1805 = vshrl.u32 %v1804, 7
        %v1806 = vsub.s32 3, %v1805
        %v1807 = vrot.slane %v869, %v1806
        %v1808 = vlaneseq
        %v1809 = vshrl.u32 %v1808, 7
        %v1810 = vsub.s32 0, %v1809
        %v1811 = vrot.slane %v870, %v1810
        %v1812 = vlaneseq
        %v1813 = vshrl.u32 %v1812, 7
        %v1814 = vsub.s32 1, %v1813
        %v1815 = vrot.slane %v870, %v1814
        %v1816 = vlaneseq
        %v1817 = vshrl.u32 %v1816, 7
        %v1818 = vsub.s32 2, %v1817
        %v1819 = vrot.slane %v870, %v1818
        %v1820 = vlaneseq
        %v1821 = vshrl.u32 %v1820, 7
        %v1822 = vsub.s32 3, %v1821
        %v1823 = vrot.slane %v870, %v1822
        %v1824 = vlaneseq
        %v1825 = vshrl.u32 %v1824, 7
        %v1826 = vsub.s32 0, %v1825
        %v1827 = vrot.slane %v871, %v1826
        %v1828 = vlaneseq
        %v1829 = vshrl.u32 %v1828, 7
        %v1830 = vsub.s32 1, %v1829
        %v1831 = vrot.slane %v871, %v1830
        %v1832 = vlaneseq
        %v1833 = vshrl.u32 %v1832, 7
        %v1834 = vsub.s32 2, %v1833
        %v1835 = vrot.slane %v871, %v1834
        %v1836 = vlaneseq
        %v1837 = vshrl.u32 %v1836, 7
        %v1838 = vsub.s32 3, %v1837
        %v1839 = vrot.slane %v871, %v1838
        %v1840 = vlaneseq
        %v1841 = vshrl.u32 %v1840, 7
        %v1842 = vsub.s32 0, %v1841
        %v1843 = vrot.slane %v872, %v1842
        %v1844 = vlaneseq
        %v1845 = vshrl.u32 %v1844, 7
        %v1846 = vsub.s32 1, %v1845
        %v1847 = vrot.slane %v872, %v1846
        %v1848 = vlaneseq
        %v1849 = vshrl.u32 %v1848, 7
        %v1850 = vsub.s32 2, %v1849
        %v1851 = vrot.slane %v872, %v1850
        %v1852 = vlaneseq
        %v1853 = vshrl.u32 %v1852, 7
        %v1854 = vsub.s32 3, %v1853
        %v1855 = vrot.slane %v872, %v1854
        %v1856 = vlaneseq
        %v1857 = vshrl.u32 %v1856, 7
        %v1858 = vsub.s32 0, %v1857
        %v1859 = vrot.slane %v873, %v1858
        %v1860 = vlaneseq
        %v1861 = vshrl.u32 %v1860, 7
        %v1862 = vsub.s32 1, %v1861
        %v1863 = vrot.slane %v873, %v1862
        %v1864 = vlaneseq
        %v1865 = vshrl.u32 %v1864, 7
        %v1866 = vsub.s32 2, %v1865
        %v1867 = vrot.slane %v873, %v1866
        %v1868 = vlaneseq
        %v1869 = vshrl.u32 %v1868, 7
        %v1870 = vsub.s32 3, %v1869
        %v1871 = vrot.slane %v873, %v1870
        %v1872 = vlaneseq
        %v1873 = vshrl.u32 %v1872, 7
        %v1874 = vsub.s32 0, %v1873
        %v1875 = vrot.slane %v874, %v1874
        %v1876 = vlaneseq
        %v1877 = vshrl.u32 %v1876, 7
        %v1878 = vsub.s32 1, %v1877
        %v1879 = vrot.slane %v874, %v1878
        %v1880 = vlaneseq
        %v1881 = vshrl.u32 %v1880, 7
        %v1882 = vsub.s32 2, %v1881
        %v1883 = vrot.slane %v874, %v1882
        %v1884 = vlaneseq
        %v1885 = vshrl.u32 %v1884, 7
        %v1886 = vsub.s32 3, %v1885
        %v1887 = vrot.slane %v874, %v1886
        %v1888 = vlaneseq
        %v1889 = vshrl.u32 %v1888, 7
        %v1890 = vsub.s32 0, %v1889
        %v1891 = vrot.slane %v875, %v1890
        %v1892 = vlaneseq
        %v1893 = vshrl.u32 %v1892, 7
        %v1894 = vsub.s32 1, %v1893
        %v1895 = vrot.slane %v875, %v1894
        %v1896 = vlaneseq
        %v1897 = vshrl.u32 %v1896, 7
        %v1898 = vsub.s32 2, %v1897
        %v1899 = vrot.slane %v875, %v1898
        %v1900 = vlaneseq
        %v1901 = vshrl.u32 %v1900, 7
        %v1902 = vsub.s32 3, %v1901
        %v1903 = vrot.slane %v875, %v1902
        %v1904 = vlaneseq
        %v1905 = vshrl.u32 %v1904, 7
        %v1906 = vsub.s32 0, %v1905
        %v1907 = vrot.slane %v876, %v1906
        %v1908 = vlaneseq
        %v1909 = vshrl.u32 %v1908, 7
        %v1910 = vsub.s32 1, %v1909
        %v1911 = vrot.slane %v876, %v1910
        %v1912 = vlaneseq
        %v1913 = vshrl.u32 %v1912, 7
        %v1914 = vsub.s32 2, %v1913
        %v1915 = vrot.slane %v876, %v1914
        %v1916 = vlaneseq
        %v1917 = vshrl.u32 %v1916, 7
        %v1918 = vsub.s32 3, %v1917
        %v1919 = vrot.slane %v876, %v1918
        %v1920 = vlaneseq
        %v1921 = vshrl.u32 %v1920, 7
        %v1922 = vsub.s32 0, %v1921
        %v1923 = vrot.slane %v877, %v1922
        %v1924 = vlaneseq
        %v1925 = vshrl.u32 %v1924, 7
        %v1926 = vsub.s32 1, %v1925
        %v1927 = vrot.slane %v877, %v1926
        %v1928 = vlaneseq
        %v1929 = vshrl.u32 %v1928, 7
        %v1930 = vsub.s32 2, %v1929
        %v1931 = vrot.slane %v877, %v1930
        %v1932 = vlaneseq
        %v1933 = vshrl.u32 %v1932, 7
        %v1934 = vsub.s32 3, %v1933
        %v1935 = vrot.slane %v877, %v1934
        %v1936 = vlaneseq
        %v1937 = vshrl.u32 %v1936, 7
        %v1938 = vsub.s32 0, %v1937
        %v1939 = vrot.slane %v878, %v1938
        %v1940 = vlaneseq
        %v1941 = vshrl.u32 %v1940, 7
        %v1942 = vsub.s32 1, %v1941
        %v1943 = vrot.slane %v878, %v1942
        %v1944 = vlaneseq
        %v1945 = vshrl.u32 %v1944, 7
        %v1946 = vsub.s32 2, %v1945
        %v1947 = vrot.slane %v878, %v1946
        %v1948 = vlaneseq
        %v1949 = vshrl.u32 %v1948, 7
        %v1950 = vsub.s32 3, %v1949
        %v1951 = vrot.slane %v878, %v1950
        %v1952 = vlaneseq
        %v1953 = vshrl.u32 %v1952, 7
        %v1954 = vsub.s32 0, %v1953
        %v1955 = vrot.slane %v879, %v1954
        %v1956 = vlaneseq
        %v1957 = vshrl.u32 %v1956, 7
        %v1958 = vsub.s32 1, %v1957
        %v1959 = vrot.slane %v879, %v1958
        %v1960 = vlaneseq
        %v1961 = vshrl.u32 %v1960, 7
        %v1962 = vsub.s32 2, %v1961
        %v1963 = vrot.slane %v879, %v1962
        %v1964 = vlaneseq
        %v1965 = vshrl.u32 %v1964, 7
        %v1966 = vsub.s32 3, %v1965
        %v1967 = vrot.slane %v879, %v1966
        %v2224 = vmul.f32 %v947, %v652
        %v2225 = vmul.f32 %v951, %v653
        %v2226 = vmul.f32 %v955, %v654
        %v2227 = vmul.f32 %v959, %v655
        %v2228 = vmul.f32 %v963, %v652
        %v2229 = vmul.f32 %v967, %v653
        %v2230 = vmul.f32 %v971, %v654
        %v2231 = vmul.f32 %v975, %v655
        %v2232 = vmul.f32 %v979, %v652
        %v2233 = vmul.f32 %v983, %v653
        %v2234 = vmul.f32 %v987, %v654
        %v2235 = vmul.f32 %v991, %v655
        %v2236 = vmul.f32 %v995, %v652
        %v2237 = vmul.f32 %v999, %v653
        %v2238 = vmul.f32 %v1003, %v654
        %v2239 = vmul.f32 %v1007, %v655
        %v2240 = vmul.f32 %v1011, %v652
        %v2241 = vmul.f32 %v1015, %v653
        %v2242 = vmul.f32 %v1019, %v654
        %v2243 = vmul.f32 %v1023, %v655
        %v2244 = vmul.f32 %v1027, %v652
        %v2245 = vmul.f32 %v1031, %v653
        %v2246 = vmul.f32 %v1035, %v654
        %v2247 = vmul.f32 %v1039, %v655
        %v2248 = vmul.f32 %v1043, %v652
        %v2249 = vmul.f32 %v1047, %v653
        %v2250 = vmul.f32 %v1051, %v654
        %v2251 = vmul.f32 %v1055, %v655
        %v2252 = vmul.f32 %v1059, %v652
        %v2253 = vmul.f32 %v1063, %v653
        %v2254 = vmul.f32 %v1067, %v654
        %v2255 = vmul.f32 %v1071, %v655
        %v2256 = vmul.f32 %v1075, %v652
        %v2257 = vmul.f32 %v1079, %v653
        %v2258 = vmul.f32 %v1083, %v654
        %v2259 = vmul.f32 %v1087, %v655
        %v2260 = vmul.f32 %v1091, %v652
        %v2261 = vmul.f32 %v1095, %v653
        %v2262 = vmul.f32 %v1099, %v654
        %v2263 = vmul.f32 %v1103, %v655
        %v2264 = vmul.f32 %v1107, %v652
        %v2265 = vmul.f32 %v1111, %v653
        %v2266 = vmul.f32 %v1115, %v654
        %v2267 = vmul.f32 %v1119, %v655
        %v2268 = vmul.f32 %v1123, %v652
        %v2269 = vmul.f32 %v1127, %v653
        %v2270 = vmul.f32 %v1131, %v654
        %v2271 = vmul.f32 %v1135, %v655
        %v2272 = vmul.f32 %v1139, %v652
        %v2273 = vmul.f32 %v1143, %v653
        %v2274 = vmul.f32 %v1147, %v654
        %v2275 = vmul.f32 %v1151, %v655
        %v2276 = vmul.f32 %v1155, %v652
        %v2277 = vmul.f32 %v1159, %v653
        %v2278 = vmul.f32 %v1163, %v654
        %v2279 = vmul.f32 %v1167, %v655
        %v2280 = vmul.f32 %v1171, %v652
        %v2281 = vmul.f32 %v1175, %v653
        %v2282 = vmul.f32 %v1179, %v654
        %v2283 = vmul.f32 %v1183, %v655
        %v2284 = vmul.f32 %v1187, %v652
        %v2285 = vmul.f32 %v1191, %v653
        %v2286 = vmul.f32 %v1195, %v654
        %v2287 = vmul.f32 %v1199, %v655
        %v2288 = vmul.f32 %v1203, %v652
        %v2289 = vmul.f32 %v1207, %v653
        %v2290 = vmul.f32 %v1211, %v654
        %v2291 = vmul.f32 %v1215, %v655
        %v2292 = vmul.f32 %v1219, %v652
        %v2293 = vmul.f32 %v1223, %v653
        %v2294 = vmul.f32 %v1227, %v654
        %v2295 = vmul.f32 %v1231, %v655
        %v2296 = vmul.f32 %v1235, %v652
        %v2297 = vmul.f32 %v1239, %v653
        %v2298 = vmul.f32 %v1243, %v654
        %v2299 = vmul.f32 %v1247, %v655
        %v2300 = vmul.f32 %v1251, %v652
        %v2301 = vmul.f32 %v1255, %v653
        %v2302 = vmul.f32 %v1259, %v654
        %v2303 = vmul.f32 %v1263, %v655
        %v2304 = vmul.f32 %v1267, %v652
        %v2305 = vmul.f32 %v1271, %v653
        %v2306 = vmul.f32 %v1275, %v654
        %v2307 = vmul.f32 %v1279, %v655
        %v2308 = vmul.f32 %v1283, %v652
        %v2309 = vmul.f32 %v1287, %v653
        %v2310 = vmul.f32 %v1291, %v654
        %v2311 = vmul.f32 %v1295, %v655
        %v2312 = vmul.f32 %v1299, %v652
        %v2313 = vmul.f32 %v1303, %v653
        %v2314 = vmul.f32 %v1307, %v654
        %v2315 = vmul.f32 %v1311, %v655
        %v2316 = vmul.f32 %v1315, %v652
        %v2317 = vmul.f32 %v1319, %v653
        %v2318 = vmul.f32 %v1323, %v654
        %v2319 = vmul.f32 %v1327, %v655
        %v2320 = vmul.f32 %v1331, %v652
        %v2321 = vmul.f32 %v1335, %v653
        %v2322 = vmul.f32 %v1339, %v654
        %v2323 = vmul.f32 %v1343, %v655
        %v2324 = vmul.f32 %v1347, %v652
        %v2325 = vmul.f32 %v1351, %v653
        %v2326 = vmul.f32 %v1355, %v654
        %v2327 = vmul.f32 %v1359, %v655
        %v2328 = vmul.f32 %v1363, %v652
        %v2329 = vmul.f32 %v1367, %v653
        %v2330 = vmul.f32 %v1371, %v654
        %v2331 = vmul.f32 %v1375, %v655
        %v2332 = vmul.f32 %v1379, %v652
        %v2333 = vmul.f32 %v1383, %v653
        %v2334 = vmul.f32 %v1387, %v654
        %v2335 = vmul.f32 %v1391, %v655
        %v2336 = vmul.f32 %v1395, %v652
        %v2337 = vmul.f32 %v1399, %v653
        %v2338 = vmul.f32 %v1403, %v654
        %v2339 = vmul.f32 %v1407, %v655
        %v2340 = vmul.f32 %v1411, %v652
        %v2341 = vmul.f32 %v1415, %v653
        %v2342 = vmul.f32 %v1419, %v654
        %v2343 = vmul.f32 %v1423, %v655
        %v2344 = vmul.f32 %v1427, %v652
        %v2345 = vmul.f32 %v1431, %v653
        %v2346 = vmul.f32 %v1435, %v654
        %v2347 = vmul.f32 %v1439, %v655
        %v2348 = vmul.f32 %v1443, %v652
        %v2349 = vmul.f32 %v1447, %v653
        %v2350 = vmul.f32 %v1451, %v654
        %v2351 = vmul.f32 %v1455, %v655
        %v2352 = vmul.f32 %v1459, %v652
        %v2353 = vmul.f32 %v1463, %v653
        %v2354 = vmul.f32 %v1467, %v654
        %v2355 = vmul.f32 %v1471, %v655
        %v2356 = vmul.f32 %v1475, %v652
        %v2357 = vmul.f32 %v1479, %v653
        %v2358 = vmul.f32 %v1483, %v654
        %v2359 = vmul.f32 %v1487, %v655
        %v2360 = vmul.f32 %v1491, %v652
        %v2361 = vmul.f32 %v1495, %v653
        %v2362 = vmul.f32 %v1499, %v654
        %v2363 = vmul.f32 %v1503, %v655
        %v2364 = vmul.f32 %v1507, %v652
        %v2365 = vmul.f32 %v1511, %v653
        %v2366 = vmul.f32 %v1515, %v654
        %v2367 = vmul.f32 %v1519, %v655
        %v2368 = vmul.f32 %v1523, %v652
        %v2369 = vmul.f32 %v1527, %v653
        %v2370 = vmul.f32 %v1531, %v654
        %v2371 = vmul.f32 %v1535, %v655
        %v2372 = vmul.f32 %v1539, %v652
        %v2373 = vmul.f32 %v1543, %v653
        %v2374 = vmul.f32 %v1547, %v654
        %v2375 = vmul.f32 %v1551, %v655
        %v2376 = vmul.f32 %v1555, %v652
        %v2377 = vmul.f32 %v1559, %v653
        %v2378 = vmul.f32 %v1563, %v654
        %v2379 = vmul.f32 %v1567, %v655
        %v2380 = vmul.f32 %v1571, %v652
        %v2381 = vmul.f32 %v1575, %v653
        %v2382 = vmul.f32 %v1579, %v654
        %v2383 = vmul.f32 %v1583, %v655
        %v2384 = vmul.f32 %v1587, %v652
        %v2385 = vmul.f32 %v1591, %v653
        %v2386 = vmul.f32 %v1595, %v654
        %v2387 = vmul.f32 %v1599, %v655
        %v2388 = vmul.f32 %v1603, %v652
        %v2389 = vmul.f32 %v1607, %v653
        %v2390 = vmul.f32 %v1611, %v654
        %v2391 = vmul.f32 %v1615, %v655
        %v2392 = vmul.f32 %v1619, %v652
        %v2393 = vmul.f32 %v1623, %v653
        %v2394 = vmul.f32 %v1627, %v654
        %v2395 = vmul.f32 %v1631, %v655
        %v2396 = vmul.f32 %v1635, %v652
        %v2397 = vmul.f32 %v1639, %v653
        %v2398 = vmul.f32 %v1643, %v654
        %v2399 = vmul.f32 %v1647, %v655
        %v2400 = vmul.f32 %v1651, %v652
        %v2401 = vmul.f32 %v1655, %v653
        %v2402 = vmul.f32 %v1659, %v654
        %v2403 = vmul.f32 %v1663, %v655
        %v2404 = vmul.f32 %v1667, %v652
        %v2405 = vmul.f32 %v1671, %v653
        %v2406 = vmul.f32 %v1675, %v654
        %v2407 = vmul.f32 %v1679, %v655
        %v2408 = vmul.f32 %v1683, %v652
        %v2409 = vmul.f32 %v1687, %v653
        %v2410 = vmul.f32 %v1691, %v654
        %v2411 = vmul.f32 %v1695, %v655
        %v2412 = vmul.f32 %v1699, %v652
        %v2413 = vmul.f32 %v1703, %v653
        %v2414 = vmul.f32 %v1707, %v654
        %v2415 = vmul.f32 %v1711, %v655
        %v2416 = vmul.f32 %v1715, %v652
        %v2417 = vmul.f32 %v1719, %v653
        %v2418 = vmul.f32 %v1723, %v654
        %v2419 = vmul.f32 %v1727, %v655
        %v2420 = vmul.f32 %v1731, %v652
        %v2421 = vmul.f32 %v1735, %v653
        %v2422 = vmul.f32 %v1739, %v654
        %v2423 = vmul.f32 %v1743, %v655
        %v2424 = vmul.f32 %v1747, %v652
        %v2425 = vmul.f32 %v1751, %v653
        %v2426 = vmul.f32 %v1755, %v654
        %v2427 = vmul.f32 %v1759, %v655
        %v2428 = vmul.f32 %v1763, %v652
        %v2429 = vmul.f32 %v1767, %v653
        %v2430 = vmul.f32 %v1771, %v654
        %v2431 = vmul.f32 %v1775, %v655
        %v2432 = vmul.f32 %v1779, %v652
        %v2433 = vmul.f32 %v1783, %v653
        %v2434 = vmul.f32 %v1787, %v654
        %v2435 = vmul.f32 %v1791, %v655
        %v2436 = vmul.f32 %v1795, %v652
        %v2437 = vmul.f32 %v1799, %v653
        %v2438 = vmul.f32 %v1803, %v654
        %v2439 = vmul.f32 %v1807, %v655
        %v2440 = vmul.f32 %v1811, %v652
        %v2441 = vmul.f32 %v1815, %v653
        %v2442 = vmul.f32 %v1819, %v654
        %v2443 = vmul.f32 %v1823, %v655
        %v2444 = vmul.f32 %v1827, %v652
        %v2445 = vmul.f32 %v1831, %v653
        %v2446 = vmul.f32 %v1835, %v654
        %v2447 = vmul.f32 %v1839, %v655
        %v2448 = vmul.f32 %v1843, %v652
        %v2449 = vmul.f32 %v1847, %v653
        %v2450 = vmul.f32 %v1851, %v654
        %v2451 = vmul.f32 %v1855, %v655
        %v2452 = vmul.f32 %v1859, %v652
        %v2453 = vmul.f32 %v1863, %v653
        %v2454 = vmul.f32 %v1867, %v654
        %v2455 = vmul.f32 %v1871, %v655
        %v2456 = vmul.f32 %v1875, %v652
        %v2457 = vmul.f32 %v1879, %v653
        %v2458 = vmul.f32 %v1883, %v654
        %v2459 = vmul.f32 %v1887, %v655
        %v2460 = vmul.f32 %v1891, %v652
        %v2461 = vmul.f32 %v1895, %v653
        %v2462 = vmul.f32 %v1899, %v654
        %v2463 = vmul.f32 %v1903, %v655
        %v2464 = vmul.f32 %v1907, %v652
        %v2465 = vmul.f32 %v1911, %v653
        %v2466 = vmul.f32 %v1915, %v654
        %v2467 = vmul.f32 %v1919, %v655
        %v2468 = vmul.f32 %v1923, %v652
        %v2469 = vmul.f32 %v1927, %v653
        %v2470 = vmul.f32 %v1931, %v654
        %v2471 = vmul.f32 %v1935, %v655
        %v2472 = vmul.f32 %v1939, %v652
        %v2473 = vmul.f32 %v1943, %v653
        %v2474 = vmul.f32 %v1947, %v654
        %v2475 = vmul.f32 %v1951, %v655
        %v2476 = vmul.f32 %v1955, %v652
        %v2477 = vmul.f32 %v1959, %v653
        %v2478 = vmul.f32 %v1963, %v654
        %v2479 = vmul.f32 %v1967, %v655
        %v2482 = vcombine.high %v158, %v158
        %v2483 = vcombine.high %v159, %v159
        %2486 = vmatprep.subr.mxu0 %v2225
        %2487 = vmatpush1.msra.mxu0 %v2224
        %2488 = vmatprep.subr.mxu0 %v2229
        %2489 = vmatpush1.msra.mxu0 %v2228
        %2490 = vmatprep.subr.mxu0 %v2233
        %2491 = vmatpush1.msra.mxu0 %v2232
        %2492 = vmatprep.subr.mxu0 %v2237
        %2493 = vmatpush1.msra.mxu0 %v2236
        %2494 = vmatprep.subr.mxu0 %v2241
        %2495 = vmatpush1.msra.mxu0 %v2240
        %2496 = vmatprep.subr.mxu0 %v2245
        %2497 = vmatpush1.msra.mxu0 %v2244
        %2498 = vmatprep.subr.mxu0 %v2249
        %2499 = vmatpush1.msra.mxu0 %v2248
        %2500 = vmatprep.subr.mxu0 %v2253
        %2501 = vmatpush1.msra.mxu0 %v2252
        %2502 = vmatprep.subr.mxu0 %v2257
        %2503 = vmatpush1.msra.mxu0 %v2256
        %2504 = vmatprep.subr.mxu0 %v2261
        %2505 = vmatpush1.msra.mxu0 %v2260
        %2506 = vmatprep.subr.mxu0 %v2265
        %2507 = vmatpush1.msra.mxu0 %v2264
        %2508 = vmatprep.subr.mxu0 %v2269
        %2509 = vmatpush1.msra.mxu0 %v2268
        %2510 = vmatprep.subr.mxu0 %v2273
        %2511 = vmatpush1.msra.mxu0 %v2272
        %2512 = vmatprep.subr.mxu0 %v2277
        %2513 = vmatpush1.msra.mxu0 %v2276
        %2514 = vmatprep.subr.mxu0 %v2281
        %2515 = vmatpush1.msra.mxu0 %v2280
        %2516 = vmatprep.subr.mxu0 %v2285
        %2517 = vmatpush1.msra.mxu0 %v2284
        %2518 = vmatprep.subr.mxu0 %v2289
        %2519 = vmatpush1.msra.mxu0 %v2288
        %2520 = vmatprep.subr.mxu0 %v2293
        %2521 = vmatpush1.msra.mxu0 %v2292
        %2522 = vmatprep.subr.mxu0 %v2297
        %2523 = vmatpush1.msra.mxu0 %v2296
        %2524 = vmatprep.subr.mxu0 %v2301
        %2525 = vmatpush1.msra.mxu0 %v2300
        %2526 = vmatprep.subr.mxu0 %v2305
        %2527 = vmatpush1.msra.mxu0 %v2304
        %2528 = vmatprep.subr.mxu0 %v2309
        %2529 = vmatpush1.msra.mxu0 %v2308
        %2530 = vmatprep.subr.mxu0 %v2313
        %2531 = vmatpush1.msra.mxu0 %v2312
        %2532 = vmatprep.subr.mxu0 %v2317
        %2533 = vmatpush1.msra.mxu0 %v2316
        %2534 = vmatprep.subr.mxu0 %v2321
        %2535 = vmatpush1.msra.mxu0 %v2320
        %2536 = vmatprep.subr.mxu0 %v2325
        %2537 = vmatpush1.msra.mxu0 %v2324
        %2538 = vmatprep.subr.mxu0 %v2329
        %2539 = vmatpush1.msra.mxu0 %v2328
        %2540 = vmatprep.subr.mxu0 %v2333
        %2541 = vmatpush1.msra.mxu0 %v2332
        %2542 = vmatprep.subr.mxu0 %v2337
        %2543 = vmatpush1.msra.mxu0 %v2336
        %2544 = vmatprep.subr.mxu0 %v2341
        %2545 = vmatpush1.msra.mxu0 %v2340
        %2546 = vmatprep.subr.mxu0 %v2345
        %2547 = vmatpush1.msra.mxu0 %v2344
        %2548 = vmatprep.subr.mxu0 %v2349
        %2549 = vmatpush1.msra.mxu0 %v2348
        %2550 = vmatprep.mubr.f32.mxu0 %v2482
        %2551 = vmatmul.mubr.f32.gmra.mrb[0].mxu0 %v158
        %v2552 = vpop.f32.mrb[0].mxu0
        %v2553 = vadd.f32 0.0, %v2552
        %v2554 = vpop.f32.mrb[0].mxu0
        %v2555 = vadd.f32 0.0, %v2554
        %2556 = vdwg.mxu0
        %2557 = vmatprep.subr.mxu0 %v2353
        %2558 = vmatpush1.msra.mxu0 %v2352
        %2559 = vmatprep.subr.mxu0 %v2357
        %2560 = vmatpush1.msra.mxu0 %v2356
        %2561 = vmatprep.subr.mxu0 %v2361
        %2562 = vmatpush1.msra.mxu0 %v2360
        %2563 = vmatprep.subr.mxu0 %v2365
        %2564 = vmatpush1.msra.mxu0 %v2364
        %2565 = vmatprep.subr.mxu0 %v2369
        %2566 = vmatpush1.msra.mxu0 %v2368
        %2567 = vmatprep.subr.mxu0 %v2373
        %2568 = vmatpush1.msra.mxu0 %v2372
        %2569 = vmatprep.subr.mxu0 %v2377
        %2570 = vmatpush1.msra.mxu0 %v2376
        %2571 = vmatprep.subr.mxu0 %v2381
        %2572 = vmatpush1.msra.mxu0 %v2380
        %2573 = vmatprep.subr.mxu0 %v2385
        %2574 = vmatpush1.msra.mxu0 %v2384
        %2575 = vmatprep.subr.mxu0 %v2389
        %2576 = vmatpush1.msra.mxu0 %v2388
        %2577 = vmatprep.subr.mxu0 %v2393
        %2578 = vmatpush1.msra.mxu0 %v2392
        %2579 = vmatprep.subr.mxu0 %v2397
        %2580 = vmatpush1.msra.mxu0 %v2396
        %2581 = vmatprep.subr.mxu0 %v2401
        %2582 = vmatpush1.msra.mxu0 %v2400
        %2583 = vmatprep.subr.mxu0 %v2405
        %2584 = vmatpush1.msra.mxu0 %v2404
        %2585 = vmatprep.subr.mxu0 %v2409
        %2586 = vmatpush1.msra.mxu0 %v2408
        %2587 = vmatprep.subr.mxu0 %v2413
        %2588 = vmatpush1.msra.mxu0 %v2412
        %2589 = vmatprep.subr.mxu0 %v2417
        %2590 = vmatpush1.msra.mxu0 %v2416
        %2591 = vmatprep.subr.mxu0 %v2421
        %2592 = vmatpush1.msra.mxu0 %v2420
        %2593 = vmatprep.subr.mxu0 %v2425
        %2594 = vmatpush1.msra.mxu0 %v2424
        %2595 = vmatprep.subr.mxu0 %v2429
        %2596 = vmatpush1.msra.mxu0 %v2428
        %2597 = vmatprep.subr.mxu0 %v2433
        %2598 = vmatpush1.msra.mxu0 %v2432
        %2599 = vmatprep.subr.mxu0 %v2437
        %2600 = vmatpush1.msra.mxu0 %v2436
        %2601 = vmatprep.subr.mxu0 %v2441
        %2602 = vmatpush1.msra.mxu0 %v2440
        %2603 = vmatprep.subr.mxu0 %v2445
        %2604 = vmatpush1.msra.mxu0 %v2444
        %2605 = vmatprep.subr.mxu0 %v2449
        %2606 = vmatpush1.msra.mxu0 %v2448
        %2607 = vmatprep.subr.mxu0 %v2453
        %2608 = vmatpush1.msra.mxu0 %v2452
        %2609 = vmatprep.subr.mxu0 %v2457
        %2610 = vmatpush1.msra.mxu0 %v2456
        %2611 = vmatprep.subr.mxu0 %v2461
        %2612 = vmatpush1.msra.mxu0 %v2460
        %2613 = vmatprep.subr.mxu0 %v2465
        %2614 = vmatpush1.msra.mxu0 %v2464
        %2615 = vmatprep.subr.mxu0 %v2469
        %2616 = vmatpush1.msra.mxu0 %v2468
        %2617 = vmatprep.subr.mxu0 %v2473
        %2618 = vmatpush1.msra.mxu0 %v2472
        %2619 = vmatprep.subr.mxu0 %v2477
        %2620 = vmatpush1.msra.mxu0 %v2476
        %2621 = vmatprep.mubr.f32.mxu0 %v2483
        %2622 = vmatmul.mubr.f32.gmra.mrb[0].mxu0 %v159
        %v2623 = vpop.f32.mrb[0].mxu0
        %v2624 = vadd.f32 %v2553, %v2623
        %v2625 = vpop.f32.mrb[0].mxu0
        %v2626 = vadd.f32 %v2555, %v2625
        %2627 = vdwg.mxu0
        %2628 = vmatprep.subr.mxu0 %v2227
        %2629 = vmatpush1.msra.mxu0 %v2226
        %2630 = vmatprep.subr.mxu0 %v2231
        %2631 = vmatpush1.msra.mxu0 %v2230
        %2632 = vmatprep.subr.mxu0 %v2235
        %2633 = vmatpush1.msra.mxu0 %v2234
        %2634 = vmatprep.subr.mxu0 %v2239
        %2635 = vmatpush1.msra.mxu0 %v2238
        %2636 = vmatprep.subr.mxu0 %v2243
        %2637 = vmatpush1.msra.mxu0 %v2242
        %2638 = vmatprep.subr.mxu0 %v2247
        %2639 = vmatpush1.msra.mxu0 %v2246
        %2640 = vmatprep.subr.mxu0 %v2251
        %2641 = vmatpush1.msra.mxu0 %v2250
        %2642 = vmatprep.subr.mxu0 %v2255
        %2643 = vmatpush1.msra.mxu0 %v2254
        %2644 = vmatprep.subr.mxu0 %v2259
        %2645 = vmatpush1.msra.mxu0 %v2258
        %2646 = vmatprep.subr.mxu0 %v2263
        %2647 = vmatpush1.msra.mxu0 %v2262
        %2648 = vmatprep.subr.mxu0 %v2267
        %2649 = vmatpush1.msra.mxu0 %v2266
        %2650 = vmatprep.subr.mxu0 %v2271
        %2651 = vmatpush1.msra.mxu0 %v2270
        %2652 = vmatprep.subr.mxu0 %v2275
        %2653 = vmatpush1.msra.mxu0 %v2274
        %2654 = vmatprep.subr.mxu0 %v2279
        %2655 = vmatpush1.msra.mxu0 %v2278
        %2656 = vmatprep.subr.mxu0 %v2283
        %2657 = vmatpush1.msra.mxu0 %v2282
        %2658 = vmatprep.subr.mxu0 %v2287
        %2659 = vmatpush1.msra.mxu0 %v2286
        %2660 = vmatprep.subr.mxu0 %v2291
        %2661 = vmatpush1.msra.mxu0 %v2290
        %2662 = vmatprep.subr.mxu0 %v2295
        %2663 = vmatpush1.msra.mxu0 %v2294
        %2664 = vmatprep.subr.mxu0 %v2299
        %2665 = vmatpush1.msra.mxu0 %v2298
        %2666 = vmatprep.subr.mxu0 %v2303
        %2667 = vmatpush1.msra.mxu0 %v2302
        %2668 = vmatprep.subr.mxu0 %v2307
        %2669 = vmatpush1.msra.mxu0 %v2306
        %2670 = vmatprep.subr.mxu0 %v2311
        %2671 = vmatpush1.msra.mxu0 %v2310
        %2672 = vmatprep.subr.mxu0 %v2315
        %2673 = vmatpush1.msra.mxu0 %v2314
        %2674 = vmatprep.subr.mxu0 %v2319
        %2675 = vmatpush1.msra.mxu0 %v2318
        %2676 = vmatprep.subr.mxu0 %v2323
        %2677 = vmatpush1.msra.mxu0 %v2322
        %2678 = vmatprep.subr.mxu0 %v2327
        %2679 = vmatpush1.msra.mxu0 %v2326
        %2680 = vmatprep.subr.mxu0 %v2331
        %2681 = vmatpush1.msra.mxu0 %v2330
        %2682 = vmatprep.subr.mxu0 %v2335
        %2683 = vmatpush1.msra.mxu0 %v2334
        %2684 = vmatprep.subr.mxu0 %v2339
        %2685 = vmatpush1.msra.mxu0 %v2338
        %2686 = vmatprep.subr.mxu0 %v2343
        %2687 = vmatpush1.msra.mxu0 %v2342
        %2688 = vmatprep.subr.mxu0 %v2347
        %2689 = vmatpush1.msra.mxu0 %v2346
        %2690 = vmatprep.subr.mxu0 %v2351
        %2691 = vmatpush1.msra.mxu0 %v2350
        %2692 = vmatprep.mubr.f32.mxu0 %v2482
        %2693 = vmatmul.mubr.f32.gmra.mrb[0].mxu0 %v158
        %v2694 = vpop.f32.mrb[0].mxu0
        %v2695 = vadd.f32 0.0, %v2694
        %v2696 = vpop.f32.mrb[0].mxu0
        %v2697 = vadd.f32 0.0, %v2696
        %2698 = vdwg.mxu0
        %2699 = vmatprep.subr.mxu0 %v2355
        %2700 = vmatpush1.msra.mxu0 %v2354
        %2701 = vmatprep.subr.mxu0 %v2359
        %2702 = vmatpush1.msra.mxu0 %v2358
        %2703 = vmatprep.subr.mxu0 %v2363
        %2704 = vmatpush1.msra.mxu0 %v2362
        %2705 = vmatprep.subr.mxu0 %v2367
        %2706 = vmatpush1.msra.mxu0 %v2366
        %2707 = vmatprep.subr.mxu0 %v2371
        %2708 = vmatpush1.msra.mxu0 %v2370
        %2709 = vmatprep.subr.mxu0 %v2375
        %2710 = vmatpush1.msra.mxu0 %v2374
        %2711 = vmatprep.subr.mxu0 %v2379
        %2712 = vmatpush1.msra.mxu0 %v2378
        %2713 = vmatprep.subr.mxu0 %v2383
        %2714 = vmatpush1.msra.mxu0 %v2382
        %2715 = vmatprep.subr.mxu0 %v2387
        %2716 = vmatpush1.msra.mxu0 %v2386
        %2717 = vmatprep.subr.mxu0 %v2391
        %2718 = vmatpush1.msra.mxu0 %v2390
        %2719 = vmatprep.subr.mxu0 %v2395
        %2720 = vmatpush1.msra.mxu0 %v2394
        %2721 = vmatprep.subr.mxu0 %v2399
        %2722 = vmatpush1.msra.mxu0 %v2398
        %2723 = vmatprep.subr.mxu0 %v2403
        %2724 = vmatpush1.msra.mxu0 %v2402
        %2725 = vmatprep.subr.mxu0 %v2407
        %2726 = vmatpush1.msra.mxu0 %v2406
        %2727 = vmatprep.subr.mxu0 %v2411
        %2728 = vmatpush1.msra.mxu0 %v2410
        %2729 = vmatprep.subr.mxu0 %v2415
        %2730 = vmatpush1.msra.mxu0 %v2414
        %2731 = vmatprep.subr.mxu0 %v2419
        %2732 = vmatpush1.msra.mxu0 %v2418
        %2733 = vmatprep.subr.mxu0 %v2423
        %2734 = vmatpush1.msra.mxu0 %v2422
        %2735 = vmatprep.subr.mxu0 %v2427
        %2736 = vmatpush1.msra.mxu0 %v2426
        %2737 = vmatprep.subr.mxu0 %v2431
        %2738 = vmatpush1.msra.mxu0 %v2430
        %2739 = vmatprep.subr.mxu0 %v2435
        %2740 = vmatpush1.msra.mxu0 %v2434
        %2741 = vmatprep.subr.mxu0 %v2439
        %2742 = vmatpush1.msra.mxu0 %v2438
        %2743 = vmatprep.subr.mxu0 %v2443
        %2744 = vmatpush1.msra.mxu0 %v2442
        %2745 = vmatprep.subr.mxu0 %v2447
        %2746 = vmatpush1.msra.mxu0 %v2446
        %2747 = vmatprep.subr.mxu0 %v2451
        %2748 = vmatpush1.msra.mxu0 %v2450
        %2749 = vmatprep.subr.mxu0 %v2455
        %2750 = vmatpush1.msra.mxu0 %v2454
        %2751 = vmatprep.subr.mxu0 %v2459
        %2752 = vmatpush1.msra.mxu0 %v2458
        %2753 = vmatprep.subr.mxu0 %v2463
        %2754 = vmatpush1.msra.mxu0 %v2462
        %2755 = vmatprep.subr.mxu0 %v2467
        %2756 = vmatpush1.msra.mxu0 %v2466
        %2757 = vmatprep.subr.mxu0 %v2471
        %2758 = vmatpush1.msra.mxu0 %v2470
        %2759 = vmatprep.subr.mxu0 %v2475
        %2760 = vmatpush1.msra.mxu0 %v2474
        %2761 = vmatprep.subr.mxu0 %v2479
        %2762 = vmatpush1.msra.mxu0 %v2478
        %2763 = vmatprep.mubr.f32.mxu0 %v2483
        %2764 = vmatmul.mubr.f32.gmra.mrb[0].mxu0 %v159
        %v2765 = vpop.f32.mrb[0].mxu0
        %v2766 = vadd.f32 %v2695, %v2765
        %v2767 = vpop.f32.mrb[0].mxu0
        %v2768 = vadd.f32 %v2697, %v2767
        %2769 = vdwg.mxu0
        %v2774 = vcombine.low %v2624, %v2626
        %v2775 = vcombine.low %v2766, %v2768
        %v2778 = vadd.f32 %v158, %v2774
        %v2779 = vadd.f32 %v159, %v2775
      $region33: #{tpu_custom_call.1} parent=27 // loop_footer
        %s157 = sadd.s32 1, %s153
      $region34: #{tpu_custom_call.1} parent=27 // loop_footer_branch
        %152 = sbr.rel target = $region30
      $region35: #{tpu_custom_call.1} parent=27 // loop_exit
        _
      %2780 = vst [vmem:[%s143] sm:$0x77] %v158
      %2781 = vst [vmem:[%s143 + $0x8] sm:$0x77] %v159
      %p2782 = scmp.lt.s32.totalorder %s13, 1
      %s2783 = scalar_select %p2782, %s13, 1
      %s2784 = smul.addr %s2783, 4
      %s2785 = smul.addr %s2784, 4
      %s2786 = scalar_lea.vmem %s2, %s2785
      // Predicated region
      $region36: #{tpu_custom_call.1} parent=27 // pred_check
        %p2787 = pneg %p78
      $region37: #{tpu_custom_call.1} parent=27 // pred_check_branch
        %2789 = sbr.rel (%p2787) target = $region39
      $region38: #{tpu_custom_call.1} parent=27 // pred_region
        _
      $region39: #{tpu_custom_call.1} parent=27 // pred_fallthru
        _
    $region28: #{tpu_custom_call.1} parent=5 // pred_fallthru
      _
    %p2790 = scmp.le.s32.totalorder 2, %s8
    // Predicated region
    $region40: #{tpu_custom_call.1} parent=5 // pred_check
      %p2791 = pneg %p2790
    $region41: #{tpu_custom_call.1} parent=5 // pred_check_branch
      %2793 = sbr.rel (%p2791) target = $region43
    $region42: #{tpu_custom_call.1} parent=5 // pred_region
      %s2794 = ssub.s32 %s8, 2
      // Predicated region
      $region44: #{tpu_custom_call.1} parent=42 // pred_check
        %p2795 = pneg %p84
      $region45: #{tpu_custom_call.1} parent=42 // pred_check_branch
        %2797 = sbr.rel (%p2795) target = $region47
      $region46: #{tpu_custom_call.1} parent=42 // pred_region
        %p2798 = scmp.lt.s32.totalorder %s14, 1
        %s2799 = scalar_select %p2798, %s14, 1
        %s2800 = smul.addr %s2799, 4
        %s2801 = smul.addr %s2800, 4
        %s2802 = scalar_lea.vmem %s2, %s2801
      $region47: #{tpu_custom_call.1} parent=42 // pred_fallthru
        _
    $region43: #{tpu_custom_call.1} parent=5 // pred_fallthru
      _
  $region6: #{tpu_custom_call.1} parent=0 // loop_footer
    %s12 = sadd.s32 1, %s8
  $region7: #{tpu_custom_call.1} parent=0 // loop_footer_branch
    %7 = sbr.rel target = $region3
  $region8: #{tpu_custom_call.1} parent=0 // loop_exit
    _

</llo_original>
